<compile_context>
chip_gen: v7x
topology: tpu7x:2x2x1
jax: 0.10.0
libtpu: 0.0.40
codegen_flags: <defaults>
</compile_context>

<pallas_src>
import jax
import jax.numpy as jnp
from jax.experimental import pallas as pl
from jax.experimental.pallas import tpu as pltpu


# ----------------------------- configuration -------------------------------
IN_DIM = 8
HIDDEN = 32
OUT_DIM = 8
KSIZE = 3
DILATION_RATE = 2
N_LAYERS = 3
GIN = 8
BATCH = 2
T = 16

HALF_K = (KSIZE - 1) // 2

# ---- packed-slab layout (row offsets, all multiples of 16 for bf16 tiles) ----
PACK_LANES = 2 * HIDDEN                          # 64 lanes
PRE_ROWS_P = 16                                  # IN_DIM=8 padded to 16
LAYER_W_ROWS = KSIZE * HIDDEN + GIN              # 104 live rows per layer block
LAYER_ROWS_P = 112                               # padded to multiple of 16
RS_ROWS_P = HIDDEN                               # 32

PRE_W_OFF = 0
LAYER_W_OFF = PRE_ROWS_P                                   # 16
RS_W_OFF = LAYER_W_OFF + N_LAYERS * LAYER_ROWS_P           # 352
RS_LAST_OFF = RS_W_OFF + (N_LAYERS - 1) * RS_ROWS_P        # 416
PROJ_W_OFF = RS_LAST_OFF + RS_ROWS_P                       # 448
BIAS_OFF = PROJ_W_OFF + RS_ROWS_P                          # 480
BIAS_ROWS_P = 16
WPACK_ROWS = BIAS_OFF + BIAS_ROWS_P                        # 496

# bias rows (within the bias block at BIAS_OFF)
B_PRE = 0
B_LAYER = 1                        # rows 1 .. N_LAYERS
B_RS = 1 + N_LAYERS                # rows for layers 0 .. N_LAYERS-2
B_RSL = B_RS + N_LAYERS - 1        # last layer res/skip bias
B_PROJ = B_RSL + 1
N_BIAS_ROWS = B_PROJ + 1           # 8


# ------------------------------- the kernel --------------------------------
def decoder_kernel(xg_ref, w_ref, out_ref):
    """Whole decoder forward in one gridless invocation.

    xg_ref : (B*T, IN_DIM + GIN + 1)  packed [x | g | mask]   (f32)
    w_ref  : (WPACK_ROWS, PACK_LANES) packed weights + biases (bf16)
    out_ref: (B*T, OUT_DIM)                                   (f32)
    """
    nrows = xg_ref.shape[0]                       # B*T (static)

    xg = xg_ref[...]
    x = xg[:, :IN_DIM]                            # lanes 0..7
    g = xg[:, IN_DIM:IN_DIM + GIN]                # lanes 8..15 (8-aligned)
    mask = xg[:, IN_DIM + GIN:IN_DIM + GIN + 1]   # trailing lane

    # Hoisted mask broadcasts (JAX does not CSE broadcast_in_dim).
    mask_in = jnp.broadcast_to(mask, (nrows, IN_DIM))
    mask_h = jnp.broadcast_to(mask, (nrows, HIDDEN))
    mask_out = jnp.broadcast_to(mask, (nrows, OUT_DIM))

    # Bias block loaded once, kept in f32 for the elementwise adds.
    bias = w_ref[BIAS_OFF:BIAS_OFF + N_BIAS_ROWS, :].astype(jnp.float32)

    # Within-batch time index; zeroes dilated-conv taps that would wrap across
    # the batch boundary (or the zero-padded sequence edges) after roll.
    row = jax.lax.broadcasted_iota(jnp.int32, (nrows, 1), 0)
    if (T & (T - 1)) == 0:
        t_idx = jnp.bitwise_and(row, T - 1)
    else:
        t_idx = jax.lax.rem(row, jnp.int32(T))

    def shifted(xc, off):
        # out[r] = xc[r + off] if (r % T) + off is a valid time step, else 0
        rolled = pltpu.roll(xc, shift=(-off) % nrows, axis=0)   # XLU slot
        ok = ((t_idx + off >= 0) & (t_idx + off < T)).astype(xc.dtype)
        return rolled * ok

    g_bf = g.astype(jnp.bfloat16)                 # reused by every layer

    # ---- pre 1x1 conv:  x = pre(x * mask) * mask
    pre_w = w_ref[PRE_W_OFF:PRE_W_OFF + IN_DIM, :HIDDEN]
    x_cur = (jnp.dot((x * mask_in).astype(jnp.bfloat16), pre_w,
                     preferred_element_type=jnp.float32)
             + bias[B_PRE:B_PRE + 1, :HIDDEN]) * mask_h          # (rows, H)

    output = jnp.zeros((nrows, HIDDEN), jnp.float32)

    for i in range(N_LAYERS):
        d = DILATION_RATE ** i
        r0 = LAYER_W_OFF + i * LAYER_ROWS_P

        # global conditioning + fused bias (in_b + cond_b)
        cond_w = w_ref[r0 + KSIZE * HIDDEN:r0 + KSIZE * HIDDEN + GIN, :]
        x_in = (jnp.dot(g_bf, cond_w, preferred_element_type=jnp.float32)
                + bias[B_LAYER + i:B_LAYER + i + 1, :])          # (rows, 2H)

        # dilated-conv taps: small separate dots (no lane-axis concatenate)
        for k in range(KSIZE):
            off = (k - HALF_K) * d
            tap = x_cur if off == 0 else shifted(x_cur, off)
            tap_w = w_ref[r0 + k * HIDDEN:r0 + (k + 1) * HIDDEN, :]
            x_in = x_in + jnp.dot(tap.astype(jnp.bfloat16), tap_w,
                                  preferred_element_type=jnp.float32)

        # fused_add_tanh_sigmoid_multiply (dropout p=0 -> identity);
        # sigmoid(z) = 0.5*tanh(0.5*z) + 0.5 keeps the gate on the EUP.
        gate = 0.5 * jnp.tanh(0.5 * x_in[:, HIDDEN:]) + 0.5
        acts = jnp.tanh(x_in[:, :HIDDEN]) * gate
        acts_bf = acts.astype(jnp.bfloat16)

        if i < N_LAYERS - 1:
            r1 = RS_W_OFF + i * RS_ROWS_P
            rs = (jnp.dot(acts_bf, w_ref[r1:r1 + HIDDEN, :],
                          preferred_element_type=jnp.float32)
                  + bias[B_RS + i:B_RS + i + 1, :])              # (rows, 2H)
            x_cur = (x_cur + rs[:, :HIDDEN]) * mask_h
            output = output + rs[:, HIDDEN:]
        else:
            rw = w_ref[RS_LAST_OFF:RS_LAST_OFF + HIDDEN, :HIDDEN]  # (H, H)
            output = output + (
                jnp.dot(acts_bf, rw, preferred_element_type=jnp.float32)
                + bias[B_RSL:B_RSL + 1, :HIDDEN])

    output = output * mask_h

    # ---- proj 1x1 conv:  out = proj(output) * mask
    pw = w_ref[PROJ_W_OFF:PROJ_W_OFF + HIDDEN, :OUT_DIM]
    y = (jnp.dot(output.astype(jnp.bfloat16), pw,
                 preferred_element_type=jnp.float32)
         + bias[B_PROJ:B_PROJ + 1, :OUT_DIM]) * mask_out
    out_ref[...] = y.astype(out_ref.dtype)


# --------------------------- parameter packing -------------------------------
def pack_params(p):
    """Pack all decoder weights + biases into ONE bf16 2-D slab (single DMA)."""
    H2 = 2 * HIDDEN

    def block(w, rows):
        return jnp.pad(w, ((0, rows - w.shape[0]),
                           (0, PACK_LANES - w.shape[1])))

    blocks = [block(p['pre_w'], PRE_ROWS_P)]                       # (16, 64)
    for i in range(N_LAYERS):
        layer = jnp.concatenate(
            [p['in_w'][i].reshape(KSIZE * HIDDEN, H2),             # taps
             p['cond_w'][:, i * H2:(i + 1) * H2]], axis=0)         # cond rows
        blocks.append(block(layer, LAYER_ROWS_P))                  # (112, 64)
    for i in range(N_LAYERS - 1):
        blocks.append(block(p['rs_w'][i], RS_ROWS_P))              # (32, 64)
    blocks.append(block(p['rs_w'][N_LAYERS - 1], RS_ROWS_P))       # (32, 64)
    blocks.append(block(p['proj_w'], RS_ROWS_P))                   # (32, 64)

    def brow(b):
        b = jnp.reshape(b, (1, -1))
        return jnp.pad(b, ((0, 0), (0, PACK_LANES - b.shape[1])))

    brows = [brow(p['pre_b'])]
    for i in range(N_LAYERS):
        brows.append(brow(p['in_b'][i] + p['cond_b'][i * H2:(i + 1) * H2]))
    for i in range(N_LAYERS - 1):
        brows.append(brow(p['rs_b'][i]))
    brows.append(brow(p['rs_b'][N_LAYERS - 1]))
    brows.append(brow(p['proj_b']))
    bias_block = jnp.concatenate(brows, axis=0)                    # (8, 64)
    blocks.append(jnp.pad(bias_block,
                          ((0, BIAS_ROWS_P - bias_block.shape[0]), (0, 0))))

    wpack = jnp.concatenate(blocks, axis=0).astype(jnp.bfloat16)
    assert wpack.shape == (WPACK_ROWS, PACK_LANES)
    return wpack


# ------------------------------ the wrapper ---------------------------------
def decoder_pallas(x, x_mask, g, params):
    B, T_, _ = x.shape
    wpack = pack_params(params)
    # single packed, row-flattened input: [x | g | mask]
    xg = jnp.concatenate([x, g, x_mask], axis=-1).reshape(
        B * T_, IN_DIM + GIN + 1)
    y = pl.pallas_call(
        decoder_kernel,
        out_shape=jax.ShapeDtypeStruct((B * T_, OUT_DIM), jnp.float32),
        in_specs=[pl.BlockSpec(memory_space=pltpu.MemorySpace.VMEM),
                  pl.BlockSpec(memory_space=pltpu.MemorySpace.VMEM)],
        out_specs=pl.BlockSpec(memory_space=pltpu.MemorySpace.VMEM),
    )(xg, wpack)
    return y.reshape(B, T_, OUT_DIM)


# --------------------------- pure-JAX reference ------------------------------
def decoder_ref(x, mask, g, p):
    H2 = 2 * HIDDEN
    T_ = x.shape[1]
    xc = (jnp.einsum('btc,ch->bth', x * mask, p['pre_w']) + p['pre_b']) * mask
    gc = jnp.einsum('btg,gc->btc', g, p['cond_w']) + p['cond_b']
    out = jnp.zeros_like(xc)
    for i in range(N_LAYERS):
        d = DILATION_RATE ** i
        pad = HALF_K * d
        xp = jnp.pad(xc, ((0, 0), (pad, pad), (0, 0)))
        x_in = p['in_b'][i] + gc[:, :, i * H2:(i + 1) * H2]
        for k in range(KSIZE):
            x_in = x_in + jnp.einsum('bth,ho->bto',
                                     xp[:, k * d:k * d + T_, :], p['in_w'][i, k])
        acts = jnp.tanh(x_in[..., :HIDDEN]) * jax.nn.sigmoid(x_in[..., HIDDEN:])
        rs = jnp.einsum('bth,ho->bto', acts, p['rs_w'][i]) + p['rs_b'][i]
        if i < N_LAYERS - 1:
            xc = (xc + rs[..., :HIDDEN]) * mask
            out = out + rs[..., HIDDEN:]
        else:
            out = out + rs
    out = out * mask
    return (jnp.einsum('bth,ho->bto', out, p['proj_w']) + p['proj_b']) * mask


# ------------------------------ param init -----------------------------------
def init_params(key):
    n_keys = 8 + 2 * N_LAYERS
    ks = list(jax.random.split(key, n_keys))
    s = 0.1
    H2 = 2 * HIDDEN
    p = {
        'pre_w': s * jax.random.normal(ks[0], (IN_DIM, HIDDEN), jnp.float32),
        'pre_b': s * jax.random.normal(ks[1], (HIDDEN,), jnp.float32),
        'cond_w': s * jax.random.normal(ks[2], (GIN, H2 * N_LAYERS), jnp.float32),
        'cond_b': s * jax.random.normal(ks[3], (H2 * N_LAYERS,), jnp.float32),
        'in_w': s * jax.random.normal(ks[4], (N_LAYERS, KSIZE, HIDDEN, H2),
                                      jnp.float32),
        'in_b': s * jax.random.normal(ks[5], (N_LAYERS, H2), jnp.float32),
        'proj_w': s * jax.random.normal(ks[6], (HIDDEN, OUT_DIM), jnp.float32),
        'proj_b': s * jax.random.normal(ks[7], (OUT_DIM,), jnp.float32),
    }
    rs_w, rs_b = [], []
    for i in range(N_LAYERS):
        co = H2 if i < N_LAYERS - 1 else HIDDEN   # last layer: res only
        rs_w.append(s * jax.random.normal(ks[8 + 2 * i], (HIDDEN, co), jnp.float32))
        rs_b.append(s * jax.random.normal(ks[9 + 2 * i], (co,), jnp.float32))
    p['rs_w'] = tuple(rs_w)
    p['rs_b'] = tuple(rs_b)
    return p


# --------------------------------- main ---------------------------------------
if __name__ == "__main__":
    key = jax.random.PRNGKey(0)
    k_x, k_g, k_p = jax.random.split(key, 3)

    # inputs (channels-last layout; torch equivalents would be (B, C, T))
    x = jax.random.normal(k_x, (BATCH, T, IN_DIM), jnp.float32)
    g = jax.random.normal(k_g, (BATCH, T, GIN), jnp.float32)
    # valid-length mask: first batch keeps 12 steps, second keeps all 16
    lengths = jnp.array([12, 16])
    x_mask = (jnp.arange(T)[None, :] < lengths[:, None]).astype(
        jnp.float32)[:, :, None]                      # (B, T, 1)

    params = init_params(k_p)

    y = jax.jit(decoder_pallas)(x, x_mask, g, params)
    y = jax.block_until_ready(y)

    y_ref = decoder_ref(x, x_mask, g, params)
    assert y.shape == (BATCH, T, OUT_DIM)
    # bf16 MXU operands/weights in the kernel vs (default-precision) f32 ref
    assert jnp.allclose(y, y_ref, atol=5e-3, rtol=5e-3), "mismatch vs reference"

    print("KERNEL_OK")
</pallas_src>

<mosaic_0001>
module attributes {stable_mosaic.version = 11 : i64} {
  func.func @decoder_kernel(%arg0: memref<32x17xf32, #tpu.memory_space<vmem>>, %arg1: memref<496x64xbf16, #tpu.memory_space<vmem>>, %arg2: memref<32x8xf32, #tpu.memory_space<vmem>>) attributes {dimension_semantics = [], scalar_prefetch = 0 : i64, scratch_operands = 0 : i64, tpu.core_type = #tpu.core_type<tc>} {
    %c0 = arith.constant 0 : index
    %c0_0 = arith.constant 0 : index
    %0 = vector.load %arg0[%c0, %c0_0] : memref<32x17xf32, #tpu.memory_space<vmem>>, vector<32x17xf32>
    %1 = vector.extract_strided_slice %0 {offsets = [0, 0], sizes = [32, 8], strides = [1, 1]} : vector<32x17xf32> to vector<32x8xf32>
    %2 = vector.extract_strided_slice %0 {offsets = [0, 8], sizes = [32, 8], strides = [1, 1]} : vector<32x17xf32> to vector<32x8xf32>
    %3 = vector.extract_strided_slice %0 {offsets = [0, 16], sizes = [32, 1], strides = [1, 1]} : vector<32x17xf32> to vector<32x1xf32>
    %4 = vector.shape_cast %3 : vector<32x1xf32> to vector<32x1xf32>
    %5 = vector.broadcast %4 : vector<32x1xf32> to vector<32x8xf32>
    %6 = vector.shape_cast %3 : vector<32x1xf32> to vector<32x1xf32>
    %7 = vector.broadcast %6 : vector<32x1xf32> to vector<32x32xf32>
    %8 = vector.shape_cast %3 : vector<32x1xf32> to vector<32x1xf32>
    %9 = vector.broadcast %8 : vector<32x1xf32> to vector<32x8xf32>
    %c480 = arith.constant 480 : index
    %c0_1 = arith.constant 0 : index
    %10 = vector.load %arg1[%c480, %c0_1] : memref<496x64xbf16, #tpu.memory_space<vmem>>, vector<8x64xbf16>
    %11 = arith.extf %10 : vector<8x64xbf16> to vector<8x64xf32>
    %12 = tpu.iota {dimensions = array<i32: 0>} : vector<32x1xi32>
    %c15_i32 = arith.constant 15 : i32
    %13 = vector.broadcast %c15_i32 : i32 to vector<32x1xi32>
    %14 = arith.andi %12, %13 : vector<32x1xi32>
    %15 = arith.truncf %2 : vector<32x8xf32> to vector<32x8xbf16>
    %c0_2 = arith.constant 0 : index
    %c0_3 = arith.constant 0 : index
    %16 = vector.load %arg1[%c0_2, %c0_3] : memref<496x64xbf16, #tpu.memory_space<vmem>>, vector<8x32xbf16>
    %17 = arith.mulf %1, %5 : vector<32x8xf32>
    %18 = arith.truncf %17 : vector<32x8xf32> to vector<32x8xbf16>
    %cst = arith.constant dense<0.000000e+00> : vector<32x32xf32>
    %19 = tpu.matmul %18, %16, %cst {dimension_numbers = #tpu.dot_dimension_numbers<[1], [0], [0], [1], [0, 0, 1, 1], [], []>} : vector<32x8xbf16>, vector<8x32xbf16>, vector<32x32xf32> -> vector<32x32xf32>
    %20 = vector.extract_strided_slice %11 {offsets = [0, 0], sizes = [1, 32], strides = [1, 1]} : vector<8x64xf32> to vector<1x32xf32>
    %21 = vector.broadcast %20 : vector<1x32xf32> to vector<32x32xf32>
    %22 = arith.addf %19, %21 : vector<32x32xf32>
    %23 = arith.mulf %22, %7 : vector<32x32xf32>
    %cst_4 = arith.constant 0.000000e+00 : f32
    %24 = vector.broadcast %cst_4 : f32 to vector<32x32xf32>
    %c112 = arith.constant 112 : index
    %c0_5 = arith.constant 0 : index
    %25 = vector.load %arg1[%c112, %c0_5] : memref<496x64xbf16, #tpu.memory_space<vmem>>, vector<8x64xbf16>
    %cst_6 = arith.constant dense<0.000000e+00> : vector<32x64xf32>
    %26 = tpu.matmul %15, %25, %cst_6 {dimension_numbers = #tpu.dot_dimension_numbers<[1], [0], [0], [1], [0, 0, 1, 1], [], []>} : vector<32x8xbf16>, vector<8x64xbf16>, vector<32x64xf32> -> vector<32x64xf32>
    %27 = vector.extract_strided_slice %11 {offsets = [1, 0], sizes = [1, 64], strides = [1, 1]} : vector<8x64xf32> to vector<1x64xf32>
    %28 = vector.broadcast %27 : vector<1x64xf32> to vector<32x64xf32>
    %29 = arith.addf %26, %28 : vector<32x64xf32>
    %c1_i32 = arith.constant 1 : i32
    %30 = tpu.dynamic_rotate %23 by %c1_i32 dim 0 : vector<32x32xf32>, i32 -> vector<32x32xf32>
    %c-1_i32 = arith.constant -1 : i32
    %31 = vector.broadcast %c-1_i32 : i32 to vector<32x1xi32>
    %32 = arith.addi %14, %31 : vector<32x1xi32>
    %c0_i32 = arith.constant 0 : i32
    %33 = vector.broadcast %c0_i32 : i32 to vector<32x1xi32>
    %34 = arith.cmpi sge, %32, %33 : vector<32x1xi32>
    %c-1_i32_7 = arith.constant -1 : i32
    %35 = vector.broadcast %c-1_i32_7 : i32 to vector<32x1xi32>
    %36 = arith.addi %14, %35 : vector<32x1xi32>
    %c16_i32 = arith.constant 16 : i32
    %37 = vector.broadcast %c16_i32 : i32 to vector<32x1xi32>
    %38 = arith.cmpi slt, %36, %37 : vector<32x1xi32>
    %39 = arith.andi %34, %38 : vector<32x1xi1>
    %40 = arith.extui %39 : vector<32x1xi1> to vector<32x1xi32>
    %41 = arith.sitofp %40 : vector<32x1xi32> to vector<32x1xf32>
    %42 = vector.broadcast %41 : vector<32x1xf32> to vector<32x32xf32>
    %43 = arith.mulf %30, %42 : vector<32x32xf32>
    %c16 = arith.constant 16 : index
    %c0_8 = arith.constant 0 : index
    %44 = vector.load %arg1[%c16, %c0_8] : memref<496x64xbf16, #tpu.memory_space<vmem>>, vector<32x64xbf16>
    %45 = arith.truncf %43 : vector<32x32xf32> to vector<32x32xbf16>
    %cst_9 = arith.constant dense<0.000000e+00> : vector<32x64xf32>
    %46 = tpu.matmul %45, %44, %cst_9 {dimension_numbers = #tpu.dot_dimension_numbers<[1], [0], [0], [1], [0, 0, 1, 1], [], []>} : vector<32x32xbf16>, vector<32x64xbf16>, vector<32x64xf32> -> vector<32x64xf32>
    %47 = arith.addf %29, %46 : vector<32x64xf32>
    %c48 = arith.constant 48 : index
    %c0_10 = arith.constant 0 : index
    %48 = vector.load %arg1[%c48, %c0_10] : memref<496x64xbf16, #tpu.memory_space<vmem>>, vector<32x64xbf16>
    %49 = arith.truncf %23 : vector<32x32xf32> to vector<32x32xbf16>
    %cst_11 = arith.constant dense<0.000000e+00> : vector<32x64xf32>
    %50 = tpu.matmul %49, %48, %cst_11 {dimension_numbers = #tpu.dot_dimension_numbers<[1], [0], [0], [1], [0, 0, 1, 1], [], []>} : vector<32x32xbf16>, vector<32x64xbf16>, vector<32x64xf32> -> vector<32x64xf32>
    %51 = arith.addf %47, %50 : vector<32x64xf32>
    %c31_i32 = arith.constant 31 : i32
    %52 = tpu.dynamic_rotate %23 by %c31_i32 dim 0 : vector<32x32xf32>, i32 -> vector<32x32xf32>
    %c1_i32_12 = arith.constant 1 : i32
    %53 = vector.broadcast %c1_i32_12 : i32 to vector<32x1xi32>
    %54 = arith.addi %14, %53 : vector<32x1xi32>
    %c0_i32_13 = arith.constant 0 : i32
    %55 = vector.broadcast %c0_i32_13 : i32 to vector<32x1xi32>
    %56 = arith.cmpi sge, %54, %55 : vector<32x1xi32>
    %c1_i32_14 = arith.constant 1 : i32
    %57 = vector.broadcast %c1_i32_14 : i32 to vector<32x1xi32>
    %58 = arith.addi %14, %57 : vector<32x1xi32>
    %c16_i32_15 = arith.constant 16 : i32
    %59 = vector.broadcast %c16_i32_15 : i32 to vector<32x1xi32>
    %60 = arith.cmpi slt, %58, %59 : vector<32x1xi32>
    %61 = arith.andi %56, %60 : vector<32x1xi1>
    %62 = arith.extui %61 : vector<32x1xi1> to vector<32x1xi32>
    %63 = arith.sitofp %62 : vector<32x1xi32> to vector<32x1xf32>
    %64 = vector.broadcast %63 : vector<32x1xf32> to vector<32x32xf32>
    %65 = arith.mulf %52, %64 : vector<32x32xf32>
    %c80 = arith.constant 80 : index
    %c0_16 = arith.constant 0 : index
    %66 = vector.load %arg1[%c80, %c0_16] : memref<496x64xbf16, #tpu.memory_space<vmem>>, vector<32x64xbf16>
    %67 = arith.truncf %65 : vector<32x32xf32> to vector<32x32xbf16>
    %cst_17 = arith.constant dense<0.000000e+00> : vector<32x64xf32>
    %68 = tpu.matmul %67, %66, %cst_17 {dimension_numbers = #tpu.dot_dimension_numbers<[1], [0], [0], [1], [0, 0, 1, 1], [], []>} : vector<32x32xbf16>, vector<32x64xbf16>, vector<32x64xf32> -> vector<32x64xf32>
    %69 = arith.addf %51, %68 : vector<32x64xf32>
    %70 = vector.extract_strided_slice %69 {offsets = [0, 32], sizes = [32, 32], strides = [1, 1]} : vector<32x64xf32> to vector<32x32xf32>
    %cst_18 = arith.constant 5.000000e-01 : f32
    %71 = vector.broadcast %cst_18 : f32 to vector<32x32xf32>
    %72 = arith.mulf %71, %70 : vector<32x32xf32>
    %73 = math.tanh %72 : vector<32x32xf32>
    %cst_19 = arith.constant 5.000000e-01 : f32
    %74 = vector.broadcast %cst_19 : f32 to vector<32x32xf32>
    %75 = arith.mulf %74, %73 : vector<32x32xf32>
    %cst_20 = arith.constant 5.000000e-01 : f32
    %76 = vector.broadcast %cst_20 : f32 to vector<32x32xf32>
    %77 = arith.addf %75, %76 : vector<32x32xf32>
    %78 = vector.extract_strided_slice %69 {offsets = [0, 0], sizes = [32, 32], strides = [1, 1]} : vector<32x64xf32> to vector<32x32xf32>
    %79 = math.tanh %78 : vector<32x32xf32>
    %80 = arith.mulf %79, %77 : vector<32x32xf32>
    %81 = arith.truncf %80 : vector<32x32xf32> to vector<32x32xbf16>
    %c352 = arith.constant 352 : index
    %c0_21 = arith.constant 0 : index
    %82 = vector.load %arg1[%c352, %c0_21] : memref<496x64xbf16, #tpu.memory_space<vmem>>, vector<32x64xbf16>
    %cst_22 = arith.constant dense<0.000000e+00> : vector<32x64xf32>
    %83 = tpu.matmul %81, %82, %cst_22 {dimension_numbers = #tpu.dot_dimension_numbers<[1], [0], [0], [1], [0, 0, 1, 1], [], []>} : vector<32x32xbf16>, vector<32x64xbf16>, vector<32x64xf32> -> vector<32x64xf32>
    %84 = vector.extract_strided_slice %11 {offsets = [4, 0], sizes = [1, 64], strides = [1, 1]} : vector<8x64xf32> to vector<1x64xf32>
    %85 = vector.broadcast %84 : vector<1x64xf32> to vector<32x64xf32>
    %86 = arith.addf %83, %85 : vector<32x64xf32>
    %87 = vector.extract_strided_slice %86 {offsets = [0, 0], sizes = [32, 32], strides = [1, 1]} : vector<32x64xf32> to vector<32x32xf32>
    %88 = arith.addf %23, %87 : vector<32x32xf32>
    %89 = arith.mulf %88, %7 : vector<32x32xf32>
    %90 = vector.extract_strided_slice %86 {offsets = [0, 32], sizes = [32, 32], strides = [1, 1]} : vector<32x64xf32> to vector<32x32xf32>
    %91 = arith.addf %24, %90 : vector<32x32xf32>
    %c224 = arith.constant 224 : index
    %c0_23 = arith.constant 0 : index
    %92 = vector.load %arg1[%c224, %c0_23] : memref<496x64xbf16, #tpu.memory_space<vmem>>, vector<8x64xbf16>
    %cst_24 = arith.constant dense<0.000000e+00> : vector<32x64xf32>
    %93 = tpu.matmul %15, %92, %cst_24 {dimension_numbers = #tpu.dot_dimension_numbers<[1], [0], [0], [1], [0, 0, 1, 1], [], []>} : vector<32x8xbf16>, vector<8x64xbf16>, vector<32x64xf32> -> vector<32x64xf32>
    %94 = vector.extract_strided_slice %11 {offsets = [2, 0], sizes = [1, 64], strides = [1, 1]} : vector<8x64xf32> to vector<1x64xf32>
    %95 = vector.broadcast %94 : vector<1x64xf32> to vector<32x64xf32>
    %96 = arith.addf %93, %95 : vector<32x64xf32>
    %c2_i32 = arith.constant 2 : i32
    %97 = tpu.dynamic_rotate %89 by %c2_i32 dim 0 : vector<32x32xf32>, i32 -> vector<32x32xf32>
    %c-2_i32 = arith.constant -2 : i32
    %98 = vector.broadcast %c-2_i32 : i32 to vector<32x1xi32>
    %99 = arith.addi %14, %98 : vector<32x1xi32>
    %c0_i32_25 = arith.constant 0 : i32
    %100 = vector.broadcast %c0_i32_25 : i32 to vector<32x1xi32>
    %101 = arith.cmpi sge, %99, %100 : vector<32x1xi32>
    %c-2_i32_26 = arith.constant -2 : i32
    %102 = vector.broadcast %c-2_i32_26 : i32 to vector<32x1xi32>
    %103 = arith.addi %14, %102 : vector<32x1xi32>
    %c16_i32_27 = arith.constant 16 : i32
    %104 = vector.broadcast %c16_i32_27 : i32 to vector<32x1xi32>
    %105 = arith.cmpi slt, %103, %104 : vector<32x1xi32>
    %106 = arith.andi %101, %105 : vector<32x1xi1>
    %107 = arith.extui %106 : vector<32x1xi1> to vector<32x1xi32>
    %108 = arith.sitofp %107 : vector<32x1xi32> to vector<32x1xf32>
    %109 = vector.broadcast %108 : vector<32x1xf32> to vector<32x32xf32>
    %110 = arith.mulf %97, %109 : vector<32x32xf32>
    %c128 = arith.constant 128 : index
    %c0_28 = arith.constant 0 : index
    %111 = vector.load %arg1[%c128, %c0_28] : memref<496x64xbf16, #tpu.memory_space<vmem>>, vector<32x64xbf16>
    %112 = arith.truncf %110 : vector<32x32xf32> to vector<32x32xbf16>
    %cst_29 = arith.constant dense<0.000000e+00> : vector<32x64xf32>
    %113 = tpu.matmul %112, %111, %cst_29 {dimension_numbers = #tpu.dot_dimension_numbers<[1], [0], [0], [1], [0, 0, 1, 1], [], []>} : vector<32x32xbf16>, vector<32x64xbf16>, vector<32x64xf32> -> vector<32x64xf32>
    %114 = arith.addf %96, %113 : vector<32x64xf32>
    %c160 = arith.constant 160 : index
    %c0_30 = arith.constant 0 : index
    %115 = vector.load %arg1[%c160, %c0_30] : memref<496x64xbf16, #tpu.memory_space<vmem>>, vector<32x64xbf16>
    %116 = arith.truncf %89 : vector<32x32xf32> to vector<32x32xbf16>
    %cst_31 = arith.constant dense<0.000000e+00> : vector<32x64xf32>
    %117 = tpu.matmul %116, %115, %cst_31 {dimension_numbers = #tpu.dot_dimension_numbers<[1], [0], [0], [1], [0, 0, 1, 1], [], []>} : vector<32x32xbf16>, vector<32x64xbf16>, vector<32x64xf32> -> vector<32x64xf32>
    %118 = arith.addf %114, %117 : vector<32x64xf32>
    %c30_i32 = arith.constant 30 : i32
    %119 = tpu.dynamic_rotate %89 by %c30_i32 dim 0 : vector<32x32xf32>, i32 -> vector<32x32xf32>
    %c2_i32_32 = arith.constant 2 : i32
    %120 = vector.broadcast %c2_i32_32 : i32 to vector<32x1xi32>
    %121 = arith.addi %14, %120 : vector<32x1xi32>
    %c0_i32_33 = arith.constant 0 : i32
    %122 = vector.broadcast %c0_i32_33 : i32 to vector<32x1xi32>
    %123 = arith.cmpi sge, %121, %122 : vector<32x1xi32>
    %c2_i32_34 = arith.constant 2 : i32
    %124 = vector.broadcast %c2_i32_34 : i32 to vector<32x1xi32>
    %125 = arith.addi %14, %124 : vector<32x1xi32>
    %c16_i32_35 = arith.constant 16 : i32
    %126 = vector.broadcast %c16_i32_35 : i32 to vector<32x1xi32>
    %127 = arith.cmpi slt, %125, %126 : vector<32x1xi32>
    %128 = arith.andi %123, %127 : vector<32x1xi1>
    %129 = arith.extui %128 : vector<32x1xi1> to vector<32x1xi32>
    %130 = arith.sitofp %129 : vector<32x1xi32> to vector<32x1xf32>
    %131 = vector.broadcast %130 : vector<32x1xf32> to vector<32x32xf32>
    %132 = arith.mulf %119, %131 : vector<32x32xf32>
    %c192 = arith.constant 192 : index
    %c0_36 = arith.constant 0 : index
    %133 = vector.load %arg1[%c192, %c0_36] : memref<496x64xbf16, #tpu.memory_space<vmem>>, vector<32x64xbf16>
    %134 = arith.truncf %132 : vector<32x32xf32> to vector<32x32xbf16>
    %cst_37 = arith.constant dense<0.000000e+00> : vector<32x64xf32>
    %135 = tpu.matmul %134, %133, %cst_37 {dimension_numbers = #tpu.dot_dimension_numbers<[1], [0], [0], [1], [0, 0, 1, 1], [], []>} : vector<32x32xbf16>, vector<32x64xbf16>, vector<32x64xf32> -> vector<32x64xf32>
    %136 = arith.addf %118, %135 : vector<32x64xf32>
    %137 = vector.extract_strided_slice %136 {offsets = [0, 32], sizes = [32, 32], strides = [1, 1]} : vector<32x64xf32> to vector<32x32xf32>
    %cst_38 = arith.constant 5.000000e-01 : f32
    %138 = vector.broadcast %cst_38 : f32 to vector<32x32xf32>
    %139 = arith.mulf %138, %137 : vector<32x32xf32>
    %140 = math.tanh %139 : vector<32x32xf32>
    %cst_39 = arith.constant 5.000000e-01 : f32
    %141 = vector.broadcast %cst_39 : f32 to vector<32x32xf32>
    %142 = arith.mulf %141, %140 : vector<32x32xf32>
    %cst_40 = arith.constant 5.000000e-01 : f32
    %143 = vector.broadcast %cst_40 : f32 to vector<32x32xf32>
    %144 = arith.addf %142, %143 : vector<32x32xf32>
    %145 = vector.extract_strided_slice %136 {offsets = [0, 0], sizes = [32, 32], strides = [1, 1]} : vector<32x64xf32> to vector<32x32xf32>
    %146 = math.tanh %145 : vector<32x32xf32>
    %147 = arith.mulf %146, %144 : vector<32x32xf32>
    %148 = arith.truncf %147 : vector<32x32xf32> to vector<32x32xbf16>
    %c384 = arith.constant 384 : index
    %c0_41 = arith.constant 0 : index
    %149 = vector.load %arg1[%c384, %c0_41] : memref<496x64xbf16, #tpu.memory_space<vmem>>, vector<32x64xbf16>
    %cst_42 = arith.constant dense<0.000000e+00> : vector<32x64xf32>
    %150 = tpu.matmul %148, %149, %cst_42 {dimension_numbers = #tpu.dot_dimension_numbers<[1], [0], [0], [1], [0, 0, 1, 1], [], []>} : vector<32x32xbf16>, vector<32x64xbf16>, vector<32x64xf32> -> vector<32x64xf32>
    %151 = vector.extract_strided_slice %11 {offsets = [5, 0], sizes = [1, 64], strides = [1, 1]} : vector<8x64xf32> to vector<1x64xf32>
    %152 = vector.broadcast %151 : vector<1x64xf32> to vector<32x64xf32>
    %153 = arith.addf %150, %152 : vector<32x64xf32>
    %154 = vector.extract_strided_slice %153 {offsets = [0, 0], sizes = [32, 32], strides = [1, 1]} : vector<32x64xf32> to vector<32x32xf32>
    %155 = arith.addf %89, %154 : vector<32x32xf32>
    %156 = arith.mulf %155, %7 : vector<32x32xf32>
    %157 = vector.extract_strided_slice %153 {offsets = [0, 32], sizes = [32, 32], strides = [1, 1]} : vector<32x64xf32> to vector<32x32xf32>
    %158 = arith.addf %91, %157 : vector<32x32xf32>
    %c336 = arith.constant 336 : index
    %c0_43 = arith.constant 0 : index
    %159 = vector.load %arg1[%c336, %c0_43] : memref<496x64xbf16, #tpu.memory_space<vmem>>, vector<8x64xbf16>
    %cst_44 = arith.constant dense<0.000000e+00> : vector<32x64xf32>
    %160 = tpu.matmul %15, %159, %cst_44 {dimension_numbers = #tpu.dot_dimension_numbers<[1], [0], [0], [1], [0, 0, 1, 1], [], []>} : vector<32x8xbf16>, vector<8x64xbf16>, vector<32x64xf32> -> vector<32x64xf32>
    %161 = vector.extract_strided_slice %11 {offsets = [3, 0], sizes = [1, 64], strides = [1, 1]} : vector<8x64xf32> to vector<1x64xf32>
    %162 = vector.broadcast %161 : vector<1x64xf32> to vector<32x64xf32>
    %163 = arith.addf %160, %162 : vector<32x64xf32>
    %c4_i32 = arith.constant 4 : i32
    %164 = tpu.dynamic_rotate %156 by %c4_i32 dim 0 : vector<32x32xf32>, i32 -> vector<32x32xf32>
    %c-4_i32 = arith.constant -4 : i32
    %165 = vector.broadcast %c-4_i32 : i32 to vector<32x1xi32>
    %166 = arith.addi %14, %165 : vector<32x1xi32>
    %c0_i32_45 = arith.constant 0 : i32
    %167 = vector.broadcast %c0_i32_45 : i32 to vector<32x1xi32>
    %168 = arith.cmpi sge, %166, %167 : vector<32x1xi32>
    %c-4_i32_46 = arith.constant -4 : i32
    %169 = vector.broadcast %c-4_i32_46 : i32 to vector<32x1xi32>
    %170 = arith.addi %14, %169 : vector<32x1xi32>
    %c16_i32_47 = arith.constant 16 : i32
    %171 = vector.broadcast %c16_i32_47 : i32 to vector<32x1xi32>
    %172 = arith.cmpi slt, %170, %171 : vector<32x1xi32>
    %173 = arith.andi %168, %172 : vector<32x1xi1>
    %174 = arith.extui %173 : vector<32x1xi1> to vector<32x1xi32>
    %175 = arith.sitofp %174 : vector<32x1xi32> to vector<32x1xf32>
    %176 = vector.broadcast %175 : vector<32x1xf32> to vector<32x32xf32>
    %177 = arith.mulf %164, %176 : vector<32x32xf32>
    %c240 = arith.constant 240 : index
    %c0_48 = arith.constant 0 : index
    %178 = vector.load %arg1[%c240, %c0_48] : memref<496x64xbf16, #tpu.memory_space<vmem>>, vector<32x64xbf16>
    %179 = arith.truncf %177 : vector<32x32xf32> to vector<32x32xbf16>
    %cst_49 = arith.constant dense<0.000000e+00> : vector<32x64xf32>
    %180 = tpu.matmul %179, %178, %cst_49 {dimension_numbers = #tpu.dot_dimension_numbers<[1], [0], [0], [1], [0, 0, 1, 1], [], []>} : vector<32x32xbf16>, vector<32x64xbf16>, vector<32x64xf32> -> vector<32x64xf32>
    %181 = arith.addf %163, %180 : vector<32x64xf32>
    %c272 = arith.constant 272 : index
    %c0_50 = arith.constant 0 : index
    %182 = vector.load %arg1[%c272, %c0_50] : memref<496x64xbf16, #tpu.memory_space<vmem>>, vector<32x64xbf16>
    %183 = arith.truncf %156 : vector<32x32xf32> to vector<32x32xbf16>
    %cst_51 = arith.constant dense<0.000000e+00> : vector<32x64xf32>
    %184 = tpu.matmul %183, %182, %cst_51 {dimension_numbers = #tpu.dot_dimension_numbers<[1], [0], [0], [1], [0, 0, 1, 1], [], []>} : vector<32x32xbf16>, vector<32x64xbf16>, vector<32x64xf32> -> vector<32x64xf32>
    %185 = arith.addf %181, %184 : vector<32x64xf32>
    %c28_i32 = arith.constant 28 : i32
    %186 = tpu.dynamic_rotate %156 by %c28_i32 dim 0 : vector<32x32xf32>, i32 -> vector<32x32xf32>
    %c4_i32_52 = arith.constant 4 : i32
    %187 = vector.broadcast %c4_i32_52 : i32 to vector<32x1xi32>
    %188 = arith.addi %14, %187 : vector<32x1xi32>
    %c0_i32_53 = arith.constant 0 : i32
    %189 = vector.broadcast %c0_i32_53 : i32 to vector<32x1xi32>
    %190 = arith.cmpi sge, %188, %189 : vector<32x1xi32>
    %c4_i32_54 = arith.constant 4 : i32
    %191 = vector.broadcast %c4_i32_54 : i32 to vector<32x1xi32>
    %192 = arith.addi %14, %191 : vector<32x1xi32>
    %c16_i32_55 = arith.constant 16 : i32
    %193 = vector.broadcast %c16_i32_55 : i32 to vector<32x1xi32>
    %194 = arith.cmpi slt, %192, %193 : vector<32x1xi32>
    %195 = arith.andi %190, %194 : vector<32x1xi1>
    %196 = arith.extui %195 : vector<32x1xi1> to vector<32x1xi32>
    %197 = arith.sitofp %196 : vector<32x1xi32> to vector<32x1xf32>
    %198 = vector.broadcast %197 : vector<32x1xf32> to vector<32x32xf32>
    %199 = arith.mulf %186, %198 : vector<32x32xf32>
    %c304 = arith.constant 304 : index
    %c0_56 = arith.constant 0 : index
    %200 = vector.load %arg1[%c304, %c0_56] : memref<496x64xbf16, #tpu.memory_space<vmem>>, vector<32x64xbf16>
    %201 = arith.truncf %199 : vector<32x32xf32> to vector<32x32xbf16>
    %cst_57 = arith.constant dense<0.000000e+00> : vector<32x64xf32>
    %202 = tpu.matmul %201, %200, %cst_57 {dimension_numbers = #tpu.dot_dimension_numbers<[1], [0], [0], [1], [0, 0, 1, 1], [], []>} : vector<32x32xbf16>, vector<32x64xbf16>, vector<32x64xf32> -> vector<32x64xf32>
    %203 = arith.addf %185, %202 : vector<32x64xf32>
    %204 = vector.extract_strided_slice %203 {offsets = [0, 32], sizes = [32, 32], strides = [1, 1]} : vector<32x64xf32> to vector<32x32xf32>
    %cst_58 = arith.constant 5.000000e-01 : f32
    %205 = vector.broadcast %cst_58 : f32 to vector<32x32xf32>
    %206 = arith.mulf %205, %204 : vector<32x32xf32>
    %207 = math.tanh %206 : vector<32x32xf32>
    %cst_59 = arith.constant 5.000000e-01 : f32
    %208 = vector.broadcast %cst_59 : f32 to vector<32x32xf32>
    %209 = arith.mulf %208, %207 : vector<32x32xf32>
    %cst_60 = arith.constant 5.000000e-01 : f32
    %210 = vector.broadcast %cst_60 : f32 to vector<32x32xf32>
    %211 = arith.addf %209, %210 : vector<32x32xf32>
    %212 = vector.extract_strided_slice %203 {offsets = [0, 0], sizes = [32, 32], strides = [1, 1]} : vector<32x64xf32> to vector<32x32xf32>
    %213 = math.tanh %212 : vector<32x32xf32>
    %214 = arith.mulf %213, %211 : vector<32x32xf32>
    %215 = arith.truncf %214 : vector<32x32xf32> to vector<32x32xbf16>
    %c416 = arith.constant 416 : index
    %c0_61 = arith.constant 0 : index
    %216 = vector.load %arg1[%c416, %c0_61] : memref<496x64xbf16, #tpu.memory_space<vmem>>, vector<32x32xbf16>
    %cst_62 = arith.constant dense<0.000000e+00> : vector<32x32xf32>
    %217 = tpu.matmul %215, %216, %cst_62 {dimension_numbers = #tpu.dot_dimension_numbers<[1], [0], [0], [1], [0, 0, 1, 1], [], []>} : vector<32x32xbf16>, vector<32x32xbf16>, vector<32x32xf32> -> vector<32x32xf32>
    %218 = vector.extract_strided_slice %11 {offsets = [6, 0], sizes = [1, 32], strides = [1, 1]} : vector<8x64xf32> to vector<1x32xf32>
    %219 = vector.broadcast %218 : vector<1x32xf32> to vector<32x32xf32>
    %220 = arith.addf %217, %219 : vector<32x32xf32>
    %221 = arith.addf %158, %220 : vector<32x32xf32>
    %222 = arith.mulf %221, %7 : vector<32x32xf32>
    %c448 = arith.constant 448 : index
    %c0_63 = arith.constant 0 : index
    %223 = vector.load %arg1[%c448, %c0_63] : memref<496x64xbf16, #tpu.memory_space<vmem>>, vector<32x8xbf16>
    %224 = arith.truncf %222 : vector<32x32xf32> to vector<32x32xbf16>
    %cst_64 = arith.constant dense<0.000000e+00> : vector<32x8xf32>
    %225 = tpu.matmul %224, %223, %cst_64 {dimension_numbers = #tpu.dot_dimension_numbers<[1], [0], [0], [1], [0, 0, 1, 1], [], []>} : vector<32x32xbf16>, vector<32x8xbf16>, vector<32x8xf32> -> vector<32x8xf32>
    %226 = vector.extract_strided_slice %11 {offsets = [7, 0], sizes = [1, 8], strides = [1, 1]} : vector<8x64xf32> to vector<1x8xf32>
    %227 = vector.broadcast %226 : vector<1x8xf32> to vector<32x8xf32>
    %228 = arith.addf %225, %227 : vector<32x8xf32>
    %229 = arith.mulf %228, %9 : vector<32x8xf32>
    %c0_65 = arith.constant 0 : index
    %c0_66 = arith.constant 0 : index
    %230 = vector.load %arg2[%c0_65, %c0_66] : memref<32x8xf32, #tpu.memory_space<vmem>>, vector<32x8xf32>
    tpu.vector_store %arg2[%c0_65, %c0_66], %229 {strides = array<i32>} : memref<32x8xf32, #tpu.memory_space<vmem>>, vector<32x8xf32>,
    return
  }
}

</mosaic_0001>

<llo_original>
// kernel: decoder_pallas.1
$region0: #{decoder_pallas.1}
  #allocation0 [shape = 'u32[]', space=smem, size = 0x4, offset = 0x4, fixed_abs, tag = 'smem constant byte address 0x4 - core index']
  #allocation1 [shape = 'u32[144,128]{1,0:T(1,128)}', space=vmem, size = 0x12000, scoped, tag = 'internal scratch']
  %s0 = inlined_call_operand.vmem [shape: f32[32,17], index: 0, kind: input, shape index: {}]
  %s1 = inlined_call_operand.vmem [shape: bf16[496,64], index: 1, kind: input, shape index: {}]
  %s2 = inlined_call_operand.vmem [shape: f32[32,8], index: 2, kind: output, shape index: {}]
  %s3 = sld [smem:[#allocation0]]
  $region18: #{decoder_pallas.1} parent=0
    _
  %s5 = ssub.s32 1, %s3
  %s6 = scalar_select 0, %s5, %s3
  // Predicated region
  $region2: #{decoder_pallas.1} parent=0 // pred_check
    _
  $region3: #{decoder_pallas.1} parent=0 // pred_check_branch
    %8 = sbr.rel (0) target = $region5
  $region4: #{decoder_pallas.1} parent=0 // pred_region
    _
  $region5: #{decoder_pallas.1} parent=0 // pred_fallthru
    _
  // Predicated region
  $region6: #{decoder_pallas.1} parent=0 // pred_check
    _
  $region7: #{decoder_pallas.1} parent=0 // pred_check_branch
    %10 = sbr.rel (0) target = $region9
  $region8: #{decoder_pallas.1} parent=0 // pred_region
    _
  $region9: #{decoder_pallas.1} parent=0 // pred_fallthru
    _
  %v12 = vld [vmem:[%s0] sm:$0xff]
  %v13 = vld [vmem:[%s0 + $0x8] sm:$0xff]
  %v14 = vld [vmem:[%s0 + $0x10] sm:$0xff]
  %v15 = vld [vmem:[%s0 + $0x18] sm:$0xff]
  %17 = vset.pattern.permute.xlu0 16
  %18 = vperm.xlu0 %17, %v12
  %v19 = vpop.permute.xlu0 %18
  %22 = vset.pattern.permute.xlu0 16
  %23 = vperm.xlu0 %22, %v13
  %v24 = vpop.permute.xlu0 %23
  %27 = vset.pattern.permute.xlu0 16
  %28 = vperm.xlu0 %27, %v14
  %v29 = vpop.permute.xlu0 %28
  %32 = vset.pattern.permute.xlu0 16
  %33 = vperm.xlu0 %32, %v15
  %v34 = vpop.permute.xlu0 %33
  %v36 = vld [vmem:[%s1 + $0xf0] sm:$0xf]
  %v37 = vunpack.c.l.bf16 %v36
  %v38 = vlaneseq
  %v39 = vshrl.u32 %v38, 7
  %v40 = vadd.s32 %v39, 8
  %v41 = vadd.s32 %v39, 16
  %v42 = vadd.s32 %v39, 24
  %v43 = vand.u32 %v39, 15
  %v44 = vand.u32 %v40, 15
  %v45 = vand.u32 %v41, 15
  %v46 = vand.u32 %v42, 15
  %v47 = vpack.c.bf16 %v13, %v12
  %v48 = vpack.c.bf16 %v15, %v14
  %v49 = vld [vmem:[%s1] sm:$0xf]
  %v50 = vmul.f32 %v12, %v19
  %v51 = vmul.f32 %v13, %v24
  %v52 = vmul.f32 %v14, %v29
  %v53 = vmul.f32 %v15, %v34
  %v54 = vpack.c.bf16 %v51, %v50
  %v55 = vpack.c.bf16 %v53, %v52
  %v56 = vlaneseq
  %v57 = vshrl.u32 %v56, 7
  %v58 = vsub.s32 0, %v57
  %v59 = vrot.slane %v37, %v58
  %vm60 = vcmask 64512
  %v62 = vsel %vm60, %v54, 0
  %v65 = vsel %vm60, %v55, 0
  %vm67 = vcmask 1043456
  %v69 = vsel %vm67, %v49, 0
  %71 = vmatprep.subr.bf16.mxu0 0
  %72 = vmatpush1.bf16.msra.mxu0 %v69
  %73 = vmatprep.subr.bf16.mxu0 0
  %74 = vmatpush1.bf16.msra.mxu0 0
  %75 = vmatprep.subr.bf16.mxu0 0
  %76 = vmatpush1.bf16.msra.mxu0 0
  %77 = vmatprep.subr.bf16.mxu0 0
  %78 = vmatpush1.bf16.msra.mxu0 0
  %79 = vmatprep.subr.bf16.mxu0 0
  %80 = vmatpush1.bf16.msra.mxu0 0
  %81 = vmatprep.subr.bf16.mxu0 0
  %82 = vmatpush1.bf16.msra.mxu0 0
  %83 = vmatprep.subr.bf16.mxu0 0
  %84 = vmatpush1.bf16.msra.mxu0 0
  %85 = vmatprep.subr.bf16.mxu0 0
  %86 = vmatpush1.bf16.msra.mxu0 0
  %87 = vmatprep.subr.bf16.mxu0 0
  %88 = vmatpush1.bf16.msra.mxu0 0
  %89 = vmatprep.subr.bf16.mxu0 0
  %90 = vmatpush1.bf16.msra.mxu0 0
  %91 = vmatprep.subr.bf16.mxu0 0
  %92 = vmatpush1.bf16.msra.mxu0 0
  %93 = vmatprep.subr.bf16.mxu0 0
  %94 = vmatpush1.bf16.msra.mxu0 0
  %95 = vmatprep.subr.bf16.mxu0 0
  %96 = vmatpush1.bf16.msra.mxu0 0
  %97 = vmatprep.subr.bf16.mxu0 0
  %98 = vmatpush1.bf16.msra.mxu0 0
  %99 = vmatprep.subr.bf16.mxu0 0
  %100 = vmatpush1.bf16.msra.mxu0 0
  %101 = vmatprep.subr.bf16.mxu0 0
  %102 = vmatpush1.bf16.msra.mxu0 0
  %103 = vmatprep.mubr.bf16.mxu0 0
  %104 = vmatmul.mubr.bf16.gmra.mrb[0].mxu0 %v62
  %v105 = vpop.f32.mrb[0].mxu0
  %v106 = vadd.f32 %v59, %v105
  %v107 = vpop.f32.mrb[0].mxu0
  %v108 = vpop.f32.mrb[0].mxu0
  %v109 = vadd.f32 %v59, %v108
  %v110 = vpop.f32.mrb[0].mxu0
  %111 = vmatprep.mubr.bf16.mxu0 0
  %112 = vmatmul.mubr.bf16.gmra.mrb[0].mxu0 %v65
  %v113 = vpop.f32.mrb[0].mxu0
  %v114 = vadd.f32 %v59, %v113
  %v115 = vpop.f32.mrb[0].mxu0
  %v116 = vpop.f32.mrb[0].mxu0
  %v117 = vadd.f32 %v59, %v116
  %v118 = vpop.f32.mrb[0].mxu0
  %119 = vdwg.mxu0
  %v120 = vmul.f32 %v106, %v19
  %v121 = vmul.f32 %v109, %v24
  %v122 = vmul.f32 %v114, %v29
  %v123 = vmul.f32 %v117, %v34
  %v124 = vld [vmem:[%s1 + $0x38] sm:$0xf]
  %v125 = vlaneseq
  %v126 = vshrl.u32 %v125, 7
  %v127 = vsub.s32 1, %v126
  %v128 = vrot.slane %v37, %v127
  %131 = vrot.lane.b32.xlu0 %v47, 120
  %v132 = vpop.permute.xlu0 %131
  %133 = vrot.lane.b32.xlu0 %v48, 120
  %v134 = vpop.permute.xlu0 %133
  %v136 = vsel %vm60, %v132, 0
  %v139 = vsel %vm60, %v134, 0
  %v142 = vsel %vm67, %v124, 0
  %144 = vmatprep.subr.bf16.mxu0 0
  %145 = vmatpush1.bf16.msra.mxu0 %v142
  %146 = vmatprep.subr.bf16.mxu0 0
  %147 = vmatpush1.bf16.msra.mxu0 0
  %148 = vmatprep.subr.bf16.mxu0 0
  %149 = vmatpush1.bf16.msra.mxu0 0
  %150 = vmatprep.subr.bf16.mxu0 0
  %151 = vmatpush1.bf16.msra.mxu0 0
  %152 = vmatprep.subr.bf16.mxu0 0
  %153 = vmatpush1.bf16.msra.mxu0 0
  %154 = vmatprep.subr.bf16.mxu0 0
  %155 = vmatpush1.bf16.msra.mxu0 0
  %156 = vmatprep.subr.bf16.mxu0 0
  %157 = vmatpush1.bf16.msra.mxu0 0
  %158 = vmatprep.subr.bf16.mxu0 0
  %159 = vmatpush1.bf16.msra.mxu0 0
  %160 = vmatprep.subr.bf16.mxu0 0
  %161 = vmatpush1.bf16.msra.mxu0 0
  %162 = vmatprep.subr.bf16.mxu0 0
  %163 = vmatpush1.bf16.msra.mxu0 0
  %164 = vmatprep.subr.bf16.mxu0 0
  %165 = vmatpush1.bf16.msra.mxu0 0
  %166 = vmatprep.subr.bf16.mxu0 0
  %167 = vmatpush1.bf16.msra.mxu0 0
  %168 = vmatprep.subr.bf16.mxu0 0
  %169 = vmatpush1.bf16.msra.mxu0 0
  %170 = vmatprep.subr.bf16.mxu0 0
  %171 = vmatpush1.bf16.msra.mxu0 0
  %172 = vmatprep.subr.bf16.mxu0 0
  %173 = vmatpush1.bf16.msra.mxu0 0
  %174 = vmatprep.subr.bf16.mxu0 0
  %175 = vmatpush1.bf16.msra.mxu0 0
  %176 = vmatprep.mubr.bf16.mxu0 0
  %177 = vmatmul.mubr.bf16.gmra.mrb[0].mxu0 %v136
  %v178 = vpop.f32.mrb[0].mxu0
  %v179 = vadd.f32 %v128, %v178
  %v180 = vpop.f32.mrb[0].mxu0
  %v181 = vpop.f32.mrb[0].mxu0
  %v182 = vadd.f32 %v128, %v181
  %v183 = vpop.f32.mrb[0].mxu0
  %184 = vmatprep.mubr.bf16.mxu0 0
  %185 = vmatmul.mubr.bf16.gmra.mrb[0].mxu0 %v139
  %v186 = vpop.f32.mrb[0].mxu0
  %v187 = vadd.f32 %v128, %v186
  %v188 = vpop.f32.mrb[0].mxu0
  %v189 = vpop.f32.mrb[0].mxu0
  %v190 = vadd.f32 %v128, %v189
  %v191 = vpop.f32.mrb[0].mxu0
  %192 = vdwg.mxu0
  %v193 = vrot.slane %v120, 7
  %v194 = vrot.slane %v121, 7
  %v195 = vrot.slane %v122, 7
  %v196 = vrot.slane %v123, 7
  %vm197 = vcmp.lt.s32.totalorder %v39, 1
  %v198 = vsel %vm197, %v195, %v196
  %v199 = vsel %vm197, %v194, %v195
  %v200 = vsel %vm197, %v193, %v194
  %v201 = vsel %vm197, %v196, %v193
  %v202 = vadd.s32 %v43, 4294967295
  %v203 = vadd.s32 %v44, 4294967295
  %v204 = vadd.s32 %v45, 4294967295
  %v205 = vadd.s32 %v46, 4294967295
  %vm206 = vcmp.ge.s32.totalorder %v202, 0
  %vm207 = vcmp.ge.s32.totalorder %v203, 0
  %vm208 = vcmp.ge.s32.totalorder %v204, 0
  %vm209 = vcmp.ge.s32.totalorder %v205, 0
  %vm210 = vcmp.lt.s32.totalorder %v202, 16
  %vm211 = vcmp.lt.s32.totalorder %v203, 16
  %vm212 = vcmp.lt.s32.totalorder %v204, 16
  %vm213 = vcmp.lt.s32.totalorder %v205, 16
  %vm214 = vmand %vm206, %vm210
  %vm215 = vmand %vm207, %vm211
  %vm216 = vmand %vm208, %vm212
  %vm217 = vmand %vm209, %vm213
  %v218 = vsel %vm214, 1, 0
  %v219 = vsel %vm215, 1, 0
  %v220 = vsel %vm216, 1, 0
  %v221 = vsel %vm217, 1, 0
  %v222 = vcvt.s32.f32 %v218
  %v223 = vcvt.s32.f32 %v219
  %v224 = vcvt.s32.f32 %v220
  %v225 = vcvt.s32.f32 %v221
  %v226 = vmul.f32 %v201, %v222
  %v227 = vmul.f32 %v200, %v223
  %v228 = vmul.f32 %v199, %v224
  %v229 = vmul.f32 %v198, %v225
  %v230 = vld [vmem:[%s1 + $0x8] sm:$0xf]
  %v231 = vld [vmem:[%s1 + $0xc] sm:$0xf]
  %v232 = vld [vmem:[%s1 + $0x10] sm:$0xf]
  %v233 = vld [vmem:[%s1 + $0x14] sm:$0xf]
  %v234 = vpack.c.bf16 %v227, %v226
  %v235 = vpack.c.bf16 %v229, %v228
  %v240 = vunpack.c.l.b16 %v230
  %v241 = vunpack.c.l.b16 %v231
  %v242 = vunpack.c.l.b16 %v232
  %v243 = vunpack.c.l.b16 %v233
  %v244 = vpack.c.b16 %v241, %v240
  %v245 = vpack.c.b16 %v243, %v242
  %vm248 = vcmask 261120
  %v250 = vsel %vm248, %v234, 0
  %v253 = vsel %vm248, %v235, 0
  %255 = vmatprep.subr.bf16.mxu0 0
  %256 = vmatpush1.bf16.msra.mxu0 %v244
  %257 = vmatprep.subr.bf16.mxu0 0
  %258 = vmatpush1.bf16.msra.mxu0 %v245
  %259 = vmatprep.subr.bf16.mxu0 0
  %260 = vmatpush1.bf16.msra.mxu0 0
  %261 = vmatprep.subr.bf16.mxu0 0
  %262 = vmatpush1.bf16.msra.mxu0 0
  %263 = vmatprep.subr.bf16.mxu0 0
  %264 = vmatpush1.bf16.msra.mxu0 0
  %265 = vmatprep.subr.bf16.mxu0 0
  %266 = vmatpush1.bf16.msra.mxu0 0
  %267 = vmatprep.subr.bf16.mxu0 0
  %268 = vmatpush1.bf16.msra.mxu0 0
  %269 = vmatprep.subr.bf16.mxu0 0
  %270 = vmatpush1.bf16.msra.mxu0 0
  %271 = vmatprep.subr.bf16.mxu0 0
  %272 = vmatpush1.bf16.msra.mxu0 0
  %273 = vmatprep.subr.bf16.mxu0 0
  %274 = vmatpush1.bf16.msra.mxu0 0
  %275 = vmatprep.subr.bf16.mxu0 0
  %276 = vmatpush1.bf16.msra.mxu0 0
  %277 = vmatprep.subr.bf16.mxu0 0
  %278 = vmatpush1.bf16.msra.mxu0 0
  %279 = vmatprep.subr.bf16.mxu0 0
  %280 = vmatpush1.bf16.msra.mxu0 0
  %281 = vmatprep.subr.bf16.mxu0 0
  %282 = vmatpush1.bf16.msra.mxu0 0
  %283 = vmatprep.subr.bf16.mxu0 0
  %284 = vmatpush1.bf16.msra.mxu0 0
  %285 = vmatprep.subr.bf16.mxu0 0
  %286 = vmatpush1.bf16.msra.mxu0 0
  %287 = vmatprep.mubr.bf16.mxu0 0
  %288 = vmatmul.mubr.bf16.gmra.mrb[0].mxu0 %v250
  %v289 = vpop.f32.mrb[0].mxu0
  %v290 = vadd.f32 0.0, %v289
  %v291 = vpop.f32.mrb[0].mxu0
  %v292 = vpop.f32.mrb[0].mxu0
  %v293 = vadd.f32 0.0, %v292
  %v294 = vpop.f32.mrb[0].mxu0
  %295 = vmatprep.mubr.bf16.mxu0 0
  %296 = vmatmul.mubr.bf16.gmra.mrb[0].mxu0 %v253
  %v297 = vpop.f32.mrb[0].mxu0
  %v298 = vadd.f32 0.0, %v297
  %v299 = vpop.f32.mrb[0].mxu0
  %v300 = vpop.f32.mrb[0].mxu0
  %v301 = vadd.f32 0.0, %v300
  %v302 = vpop.f32.mrb[0].mxu0
  %303 = vdwg.mxu0
  %v304 = vadd.f32 %v179, %v290
  %v305 = vadd.f32 %v182, %v293
  %v306 = vadd.f32 %v187, %v298
  %v307 = vadd.f32 %v190, %v301
  %v308 = vld [vmem:[%s1 + $0x18] sm:$0xf]
  %v309 = vld [vmem:[%s1 + $0x1c] sm:$0xf]
  %v310 = vld [vmem:[%s1 + $0x20] sm:$0xf]
  %v311 = vld [vmem:[%s1 + $0x24] sm:$0xf]
  %v312 = vpack.c.bf16 %v121, %v120
  %v313 = vpack.c.bf16 %v123, %v122
  %v318 = vunpack.c.l.b16 %v308
  %v319 = vunpack.c.l.b16 %v309
  %v320 = vunpack.c.l.b16 %v310
  %v321 = vunpack.c.l.b16 %v311
  %v322 = vpack.c.b16 %v319, %v318
  %v323 = vpack.c.b16 %v321, %v320
  %v327 = vsel %vm248, %v312, 0
  %v330 = vsel %vm248, %v313, 0
  %332 = vmatprep.subr.bf16.mxu0 0
  %333 = vmatpush1.bf16.msra.mxu0 %v322
  %334 = vmatprep.subr.bf16.mxu0 0
  %335 = vmatpush1.bf16.msra.mxu0 %v323
  %336 = vmatprep.subr.bf16.mxu0 0
  %337 = vmatpush1.bf16.msra.mxu0 0
  %338 = vmatprep.subr.bf16.mxu0 0
  %339 = vmatpush1.bf16.msra.mxu0 0
  %340 = vmatprep.subr.bf16.mxu0 0
  %341 = vmatpush1.bf16.msra.mxu0 0
  %342 = vmatprep.subr.bf16.mxu0 0
  %343 = vmatpush1.bf16.msra.mxu0 0
  %344 = vmatprep.subr.bf16.mxu0 0
  %345 = vmatpush1.bf16.msra.mxu0 0
  %346 = vmatprep.subr.bf16.mxu0 0
  %347 = vmatpush1.bf16.msra.mxu0 0
  %348 = vmatprep.subr.bf16.mxu0 0
  %349 = vmatpush1.bf16.msra.mxu0 0
  %350 = vmatprep.subr.bf16.mxu0 0
  %351 = vmatpush1.bf16.msra.mxu0 0
  %352 = vmatprep.subr.bf16.mxu0 0
  %353 = vmatpush1.bf16.msra.mxu0 0
  %354 = vmatprep.subr.bf16.mxu0 0
  %355 = vmatpush1.bf16.msra.mxu0 0
  %356 = vmatprep.subr.bf16.mxu0 0
  %357 = vmatpush1.bf16.msra.mxu0 0
  %358 = vmatprep.subr.bf16.mxu0 0
  %359 = vmatpush1.bf16.msra.mxu0 0
  %360 = vmatprep.subr.bf16.mxu0 0
  %361 = vmatpush1.bf16.msra.mxu0 0
  %362 = vmatprep.subr.bf16.mxu0 0
  %363 = vmatpush1.bf16.msra.mxu0 0
  %364 = vmatprep.mubr.bf16.mxu0 0
  %365 = vmatmul.mubr.bf16.gmra.mrb[0].mxu0 %v327
  %v366 = vpop.f32.mrb[0].mxu0
  %v367 = vadd.f32 0.0, %v366
  %v368 = vpop.f32.mrb[0].mxu0
  %v369 = vpop.f32.mrb[0].mxu0
  %v370 = vadd.f32 0.0, %v369
  %v371 = vpop.f32.mrb[0].mxu0
  %372 = vmatprep.mubr.bf16.mxu0 0
  %373 = vmatmul.mubr.bf16.gmra.mrb[0].mxu0 %v330
  %v374 = vpop.f32.mrb[0].mxu0
  %v375 = vadd.f32 0.0, %v374
  %v376 = vpop.f32.mrb[0].mxu0
  %v377 = vpop.f32.mrb[0].mxu0
  %v378 = vadd.f32 0.0, %v377
  %v379 = vpop.f32.mrb[0].mxu0
  %380 = vdwg.mxu0
  %v381 = vadd.f32 %v304, %v367
  %v382 = vadd.f32 %v305, %v370
  %v383 = vadd.f32 %v306, %v375
  %v384 = vadd.f32 %v307, %v378
  %v385 = vrot.slane %v120, 1
  %v386 = vrot.slane %v121, 1
  %v387 = vrot.slane %v122, 1
  %v388 = vrot.slane %v123, 1
  %vm389 = vcmp.lt.s32.totalorder %v39, 7
  %v390 = vsel %vm389, %v387, %v388
  %v391 = vsel %vm389, %v386, %v387
  %v392 = vsel %vm389, %v385, %v386
  %v393 = vsel %vm389, %v388, %v385
  %v394 = vadd.s32 %v43, 1
  %v395 = vadd.s32 %v44, 1
  %v396 = vadd.s32 %v45, 1
  %v397 = vadd.s32 %v46, 1
  %vm398 = vcmp.ge.s32.totalorder %v394, 0
  %vm399 = vcmp.ge.s32.totalorder %v395, 0
  %vm400 = vcmp.ge.s32.totalorder %v396, 0
  %vm401 = vcmp.ge.s32.totalorder %v397, 0
  %vm402 = vcmp.lt.s32.totalorder %v394, 16
  %vm403 = vcmp.lt.s32.totalorder %v395, 16
  %vm404 = vcmp.lt.s32.totalorder %v396, 16
  %vm405 = vcmp.lt.s32.totalorder %v397, 16
  %vm406 = vmand %vm398, %vm402
  %vm407 = vmand %vm399, %vm403
  %vm408 = vmand %vm400, %vm404
  %vm409 = vmand %vm401, %vm405
  %v410 = vsel %vm406, 1, 0
  %v411 = vsel %vm407, 1, 0
  %v412 = vsel %vm408, 1, 0
  %v413 = vsel %vm409, 1, 0
  %v414 = vcvt.s32.f32 %v410
  %v415 = vcvt.s32.f32 %v411
  %v416 = vcvt.s32.f32 %v412
  %v417 = vcvt.s32.f32 %v413
  %v418 = vmul.f32 %v392, %v414
  %v419 = vmul.f32 %v391, %v415
  %v420 = vmul.f32 %v390, %v416
  %v421 = vmul.f32 %v393, %v417
  %v422 = vld [vmem:[%s1 + $0x28] sm:$0xf]
  %v423 = vld [vmem:[%s1 + $0x2c] sm:$0xf]
  %v424 = vld [vmem:[%s1 + $0x30] sm:$0xf]
  %v425 = vld [vmem:[%s1 + $0x34] sm:$0xf]
  %v426 = vpack.c.bf16 %v419, %v418
  %v427 = vpack.c.bf16 %v421, %v420
  %v432 = vunpack.c.l.b16 %v422
  %v433 = vunpack.c.l.b16 %v423
  %v434 = vunpack.c.l.b16 %v424
  %v435 = vunpack.c.l.b16 %v425
  %v436 = vpack.c.b16 %v433, %v432
  %v437 = vpack.c.b16 %v435, %v434
  %v441 = vsel %vm248, %v426, 0
  %v444 = vsel %vm248, %v427, 0
  %446 = vmatprep.subr.bf16.mxu0 0
  %447 = vmatpush1.bf16.msra.mxu0 %v436
  %448 = vmatprep.subr.bf16.mxu0 0
  %449 = vmatpush1.bf16.msra.mxu0 %v437
  %450 = vmatprep.subr.bf16.mxu0 0
  %451 = vmatpush1.bf16.msra.mxu0 0
  %452 = vmatprep.subr.bf16.mxu0 0
  %453 = vmatpush1.bf16.msra.mxu0 0
  %454 = vmatprep.subr.bf16.mxu0 0
  %455 = vmatpush1.bf16.msra.mxu0 0
  %456 = vmatprep.subr.bf16.mxu0 0
  %457 = vmatpush1.bf16.msra.mxu0 0
  %458 = vmatprep.subr.bf16.mxu0 0
  %459 = vmatpush1.bf16.msra.mxu0 0
  %460 = vmatprep.subr.bf16.mxu0 0
  %461 = vmatpush1.bf16.msra.mxu0 0
  %462 = vmatprep.subr.bf16.mxu0 0
  %463 = vmatpush1.bf16.msra.mxu0 0
  %464 = vmatprep.subr.bf16.mxu0 0
  %465 = vmatpush1.bf16.msra.mxu0 0
  %466 = vmatprep.subr.bf16.mxu0 0
  %467 = vmatpush1.bf16.msra.mxu0 0
  %468 = vmatprep.subr.bf16.mxu0 0
  %469 = vmatpush1.bf16.msra.mxu0 0
  %470 = vmatprep.subr.bf16.mxu0 0
  %471 = vmatpush1.bf16.msra.mxu0 0
  %472 = vmatprep.subr.bf16.mxu0 0
  %473 = vmatpush1.bf16.msra.mxu0 0
  %474 = vmatprep.subr.bf16.mxu0 0
  %475 = vmatpush1.bf16.msra.mxu0 0
  %476 = vmatprep.subr.bf16.mxu0 0
  %477 = vmatpush1.bf16.msra.mxu0 0
  %478 = vmatprep.mubr.bf16.mxu0 0
  %479 = vmatmul.mubr.bf16.gmra.mrb[0].mxu0 %v441
  %v480 = vpop.f32.mrb[0].mxu0
  %v481 = vadd.f32 0.0, %v480
  %v482 = vpop.f32.mrb[0].mxu0
  %v483 = vpop.f32.mrb[0].mxu0
  %v484 = vadd.f32 0.0, %v483
  %v485 = vpop.f32.mrb[0].mxu0
  %486 = vmatprep.mubr.bf16.mxu0 0
  %487 = vmatmul.mubr.bf16.gmra.mrb[0].mxu0 %v444
  %v488 = vpop.f32.mrb[0].mxu0
  %v489 = vadd.f32 0.0, %v488
  %v490 = vpop.f32.mrb[0].mxu0
  %v491 = vpop.f32.mrb[0].mxu0
  %v492 = vadd.f32 0.0, %v491
  %v493 = vpop.f32.mrb[0].mxu0
  %494 = vdwg.mxu0
  %v495 = vadd.f32 %v381, %v481
  %v496 = vadd.f32 %v382, %v484
  %v497 = vadd.f32 %v383, %v489
  %v498 = vadd.f32 %v384, %v492
  %v499 = vmul.f32 %v495, 0.5
  %v500 = vmul.f32 %v496, 0.5
  %v501 = vmul.f32 %v497, 0.5
  %v502 = vmul.f32 %v498, 0.5
  %v503 = vtanh.pop %v499
  %v504 = vtanh.pop %v500
  %v505 = vtanh.pop %v501
  %v506 = vtanh.pop %v502
  %v507 = vmul.f32 %v503, 0.5
  %v508 = vmul.f32 %v504, 0.5
  %v509 = vmul.f32 %v505, 0.5
  %v510 = vmul.f32 %v506, 0.5
  %v511 = vadd.f32 %v507, 0.5
  %v512 = vadd.f32 %v508, 0.5
  %v513 = vadd.f32 %v509, 0.5
  %v514 = vadd.f32 %v510, 0.5
  %v515 = vtanh.pop %v495
  %v516 = vtanh.pop %v496
  %v517 = vtanh.pop %v497
  %v518 = vtanh.pop %v498
  %523 = vrot.lane.b32.xlu0 %v511, 96
  %v524 = vpop.permute.xlu0 %523
  %525 = vrot.lane.b32.xlu0 %v512, 96
  %v526 = vpop.permute.xlu0 %525
  %527 = vrot.lane.b32.xlu0 %v513, 96
  %v528 = vpop.permute.xlu0 %527
  %529 = vrot.lane.b32.xlu0 %v514, 96
  %v530 = vpop.permute.xlu0 %529
  %v535 = vmul.f32 %v515, %v524
  %v536 = vmul.f32 %v516, %v526
  %v537 = vmul.f32 %v517, %v528
  %v538 = vmul.f32 %v518, %v530
  %v539 = vpack.c.bf16 %v536, %v535
  %v540 = vpack.c.bf16 %v538, %v537
  %v541 = vld [vmem:[%s1 + $0xb0] sm:$0xf]
  %v542 = vld [vmem:[%s1 + $0xb4] sm:$0xf]
  %v543 = vld [vmem:[%s1 + $0xb8] sm:$0xf]
  %v544 = vld [vmem:[%s1 + $0xbc] sm:$0xf]
  %v545 = vlaneseq
  %v546 = vshrl.u32 %v545, 7
  %v547 = vsub.s32 4, %v546
  %v548 = vrot.slane %v37, %v547
  %v553 = vunpack.c.l.b16 %v541
  %v554 = vunpack.c.l.b16 %v542
  %v555 = vunpack.c.l.b16 %v543
  %v556 = vunpack.c.l.b16 %v544
  %v557 = vpack.c.b16 %v554, %v553
  %v558 = vpack.c.b16 %v556, %v555
  %v562 = vsel %vm248, %v539, 0
  %v565 = vsel %vm248, %v540, 0
  %567 = vmatprep.subr.bf16.mxu0 0
  %568 = vmatpush1.bf16.msra.mxu0 %v557
  %569 = vmatprep.subr.bf16.mxu0 0
  %570 = vmatpush1.bf16.msra.mxu0 %v558
  %571 = vmatprep.subr.bf16.mxu0 0
  %572 = vmatpush1.bf16.msra.mxu0 0
  %573 = vmatprep.subr.bf16.mxu0 0
  %574 = vmatpush1.bf16.msra.mxu0 0
  %575 = vmatprep.subr.bf16.mxu0 0
  %576 = vmatpush1.bf16.msra.mxu0 0
  %577 = vmatprep.subr.bf16.mxu0 0
  %578 = vmatpush1.bf16.msra.mxu0 0
  %579 = vmatprep.subr.bf16.mxu0 0
  %580 = vmatpush1.bf16.msra.mxu0 0
  %581 = vmatprep.subr.bf16.mxu0 0
  %582 = vmatpush1.bf16.msra.mxu0 0
  %583 = vmatprep.subr.bf16.mxu0 0
  %584 = vmatpush1.bf16.msra.mxu0 0
  %585 = vmatprep.subr.bf16.mxu0 0
  %586 = vmatpush1.bf16.msra.mxu0 0
  %587 = vmatprep.subr.bf16.mxu0 0
  %588 = vmatpush1.bf16.msra.mxu0 0
  %589 = vmatprep.subr.bf16.mxu0 0
  %590 = vmatpush1.bf16.msra.mxu0 0
  %591 = vmatprep.subr.bf16.mxu0 0
  %592 = vmatpush1.bf16.msra.mxu0 0
  %593 = vmatprep.subr.bf16.mxu0 0
  %594 = vmatpush1.bf16.msra.mxu0 0
  %595 = vmatprep.subr.bf16.mxu0 0
  %596 = vmatpush1.bf16.msra.mxu0 0
  %597 = vmatprep.subr.bf16.mxu0 0
  %598 = vmatpush1.bf16.msra.mxu0 0
  %599 = vmatprep.mubr.bf16.mxu0 0
  %600 = vmatmul.mubr.bf16.gmra.mrb[0].mxu0 %v562
  %v601 = vpop.f32.mrb[0].mxu0
  %v602 = vadd.f32 %v548, %v601
  %v603 = vpop.f32.mrb[0].mxu0
  %v604 = vpop.f32.mrb[0].mxu0
  %v605 = vadd.f32 %v548, %v604
  %v606 = vpop.f32.mrb[0].mxu0
  %607 = vmatprep.mubr.bf16.mxu0 0
  %608 = vmatmul.mubr.bf16.gmra.mrb[0].mxu0 %v565
  %v609 = vpop.f32.mrb[0].mxu0
  %v610 = vadd.f32 %v548, %v609
  %v611 = vpop.f32.mrb[0].mxu0
  %v612 = vpop.f32.mrb[0].mxu0
  %v613 = vadd.f32 %v548, %v612
  %v614 = vpop.f32.mrb[0].mxu0
  %615 = vdwg.mxu0
  %v616 = vadd.f32 %v120, %v602
  %v617 = vadd.f32 %v121, %v605
  %v618 = vadd.f32 %v122, %v610
  %v619 = vadd.f32 %v123, %v613
  %v620 = vmul.f32 %v616, %v19
  %v621 = vmul.f32 %v617, %v24
  %v622 = vmul.f32 %v618, %v29
  %v623 = vmul.f32 %v619, %v34
  %v624 = vadd.f32 %v602, 0.0
  %v625 = vadd.f32 %v605, 0.0
  %v626 = vadd.f32 %v610, 0.0
  %v627 = vadd.f32 %v613, 0.0
  %v628 = vld [vmem:[%s1 + $0x70] sm:$0xf]
  %v629 = vlaneseq
  %v630 = vshrl.u32 %v629, 7
  %v631 = vsub.s32 2, %v630
  %v632 = vrot.slane %v37, %v631
  %v634 = vsel %vm67, %v628, 0
  %636 = vmatprep.subr.bf16.mxu0 0
  %637 = vmatpush1.bf16.msra.mxu0 %v634
  %638 = vmatprep.subr.bf16.mxu0 0
  %639 = vmatpush1.bf16.msra.mxu0 0
  %640 = vmatprep.subr.bf16.mxu0 0
  %641 = vmatpush1.bf16.msra.mxu0 0
  %642 = vmatprep.subr.bf16.mxu0 0
  %643 = vmatpush1.bf16.msra.mxu0 0
  %644 = vmatprep.subr.bf16.mxu0 0
  %645 = vmatpush1.bf16.msra.mxu0 0
  %646 = vmatprep.subr.bf16.mxu0 0
  %647 = vmatpush1.bf16.msra.mxu0 0
  %648 = vmatprep.subr.bf16.mxu0 0
  %649 = vmatpush1.bf16.msra.mxu0 0
  %650 = vmatprep.subr.bf16.mxu0 0
  %651 = vmatpush1.bf16.msra.mxu0 0
  %652 = vmatprep.subr.bf16.mxu0 0
  %653 = vmatpush1.bf16.msra.mxu0 0
  %654 = vmatprep.subr.bf16.mxu0 0
  %655 = vmatpush1.bf16.msra.mxu0 0
  %656 = vmatprep.subr.bf16.mxu0 0
  %657 = vmatpush1.bf16.msra.mxu0 0
  %658 = vmatprep.subr.bf16.mxu0 0
  %659 = vmatpush1.bf16.msra.mxu0 0
  %660 = vmatprep.subr.bf16.mxu0 0
  %661 = vmatpush1.bf16.msra.mxu0 0
  %662 = vmatprep.subr.bf16.mxu0 0
  %663 = vmatpush1.bf16.msra.mxu0 0
  %664 = vmatprep.subr.bf16.mxu0 0
  %665 = vmatpush1.bf16.msra.mxu0 0
  %666 = vmatprep.subr.bf16.mxu0 0
  %667 = vmatpush1.bf16.msra.mxu0 0
  %668 = vmatprep.mubr.bf16.mxu0 0
  %669 = vmatmul.mubr.bf16.gmra.mrb[0].mxu0 %v136
  %v670 = vpop.f32.mrb[0].mxu0
  %v671 = vadd.f32 %v632, %v670
  %v672 = vpop.f32.mrb[0].mxu0
  %v673 = vpop.f32.mrb[0].mxu0
  %v674 = vadd.f32 %v632, %v673
  %v675 = vpop.f32.mrb[0].mxu0
  %676 = vmatprep.mubr.bf16.mxu0 0
  %677 = vmatmul.mubr.bf16.gmra.mrb[0].mxu0 %v139
  %v678 = vpop.f32.mrb[0].mxu0
  %v679 = vadd.f32 %v632, %v678
  %v680 = vpop.f32.mrb[0].mxu0
  %v681 = vpop.f32.mrb[0].mxu0
  %v682 = vadd.f32 %v632, %v681
  %v683 = vpop.f32.mrb[0].mxu0
  %684 = vdwg.mxu0
  %v685 = vrot.slane %v620, 6
  %v686 = vrot.slane %v621, 6
  %v687 = vrot.slane %v622, 6
  %v688 = vrot.slane %v623, 6
  %vm689 = vcmp.lt.s32.totalorder %v39, 2
  %v690 = vsel %vm689, %v687, %v688
  %v691 = vsel %vm689, %v686, %v687
  %v692 = vsel %vm689, %v685, %v686
  %v693 = vsel %vm689, %v688, %v685
  %v694 = vadd.s32 %v43, 4294967294
  %v695 = vadd.s32 %v44, 4294967294
  %v696 = vadd.s32 %v45, 4294967294
  %v697 = vadd.s32 %v46, 4294967294
  %vm698 = vcmp.ge.s32.totalorder %v694, 0
  %vm699 = vcmp.ge.s32.totalorder %v695, 0
  %vm700 = vcmp.ge.s32.totalorder %v696, 0
  %vm701 = vcmp.ge.s32.totalorder %v697, 0
  %vm702 = vcmp.lt.s32.totalorder %v694, 16
  %vm703 = vcmp.lt.s32.totalorder %v695, 16
  %vm704 = vcmp.lt.s32.totalorder %v696, 16
  %vm705 = vcmp.lt.s32.totalorder %v697, 16
  %vm706 = vmand %vm698, %vm702
  %vm707 = vmand %vm699, %vm703
  %vm708 = vmand %vm700, %vm704
  %vm709 = vmand %vm701, %vm705
  %v710 = vsel %vm706, 1, 0
  %v711 = vsel %vm707, 1, 0
  %v712 = vsel %vm708, 1, 0
  %v713 = vsel %vm709, 1, 0
  %v714 = vcvt.s32.f32 %v710
  %v715 = vcvt.s32.f32 %v711
  %v716 = vcvt.s32.f32 %v712
  %v717 = vcvt.s32.f32 %v713
  %v718 = vmul.f32 %v693, %v714
  %v719 = vmul.f32 %v692, %v715
  %v720 = vmul.f32 %v691, %v716
  %v721 = vmul.f32 %v690, %v717
  %v722 = vld [vmem:[%s1 + $0x40] sm:$0xf]
  %v723 = vld [vmem:[%s1 + $0x44] sm:$0xf]
  %v724 = vld [vmem:[%s1 + $0x48] sm:$0xf]
  %v725 = vld [vmem:[%s1 + $0x4c] sm:$0xf]
  %v726 = vpack.c.bf16 %v719, %v718
  %v727 = vpack.c.bf16 %v721, %v720
  %v732 = vunpack.c.l.b16 %v722
  %v733 = vunpack.c.l.b16 %v723
  %v734 = vunpack.c.l.b16 %v724
  %v735 = vunpack.c.l.b16 %v725
  %v736 = vpack.c.b16 %v733, %v732
  %v737 = vpack.c.b16 %v735, %v734
  %v741 = vsel %vm248, %v726, 0
  %v744 = vsel %vm248, %v727, 0
  %746 = vmatprep.subr.bf16.mxu0 0
  %747 = vmatpush1.bf16.msra.mxu0 %v736
  %748 = vmatprep.subr.bf16.mxu0 0
  %749 = vmatpush1.bf16.msra.mxu0 %v737
  %750 = vmatprep.subr.bf16.mxu0 0
  %751 = vmatpush1.bf16.msra.mxu0 0
  %752 = vmatprep.subr.bf16.mxu0 0
  %753 = vmatpush1.bf16.msra.mxu0 0
  %754 = vmatprep.subr.bf16.mxu0 0
  %755 = vmatpush1.bf16.msra.mxu0 0
  %756 = vmatprep.subr.bf16.mxu0 0
  %757 = vmatpush1.bf16.msra.mxu0 0
  %758 = vmatprep.subr.bf16.mxu0 0
  %759 = vmatpush1.bf16.msra.mxu0 0
  %760 = vmatprep.subr.bf16.mxu0 0
  %761 = vmatpush1.bf16.msra.mxu0 0
  %762 = vmatprep.subr.bf16.mxu0 0
  %763 = vmatpush1.bf16.msra.mxu0 0
  %764 = vmatprep.subr.bf16.mxu0 0
  %765 = vmatpush1.bf16.msra.mxu0 0
  %766 = vmatprep.subr.bf16.mxu0 0
  %767 = vmatpush1.bf16.msra.mxu0 0
  %768 = vmatprep.subr.bf16.mxu0 0
  %769 = vmatpush1.bf16.msra.mxu0 0
  %770 = vmatprep.subr.bf16.mxu0 0
  %771 = vmatpush1.bf16.msra.mxu0 0
  %772 = vmatprep.subr.bf16.mxu0 0
  %773 = vmatpush1.bf16.msra.mxu0 0
  %774 = vmatprep.subr.bf16.mxu0 0
  %775 = vmatpush1.bf16.msra.mxu0 0
  %776 = vmatprep.subr.bf16.mxu0 0
  %777 = vmatpush1.bf16.msra.mxu0 0
  %778 = vmatprep.mubr.bf16.mxu0 0
  %779 = vmatmul.mubr.bf16.gmra.mrb[0].mxu0 %v741
  %v780 = vpop.f32.mrb[0].mxu0
  %v781 = vadd.f32 0.0, %v780
  %v782 = vpop.f32.mrb[0].mxu0
  %v783 = vpop.f32.mrb[0].mxu0
  %v784 = vadd.f32 0.0, %v783
  %v785 = vpop.f32.mrb[0].mxu0
  %786 = vmatprep.mubr.bf16.mxu0 0
  %787 = vmatmul.mubr.bf16.gmra.mrb[0].mxu0 %v744
  %v788 = vpop.f32.mrb[0].mxu0
  %v789 = vadd.f32 0.0, %v788
  %v790 = vpop.f32.mrb[0].mxu0
  %v791 = vpop.f32.mrb[0].mxu0
  %v792 = vadd.f32 0.0, %v791
  %v793 = vpop.f32.mrb[0].mxu0
  %794 = vdwg.mxu0
  %v795 = vadd.f32 %v671, %v781
  %v796 = vadd.f32 %v674, %v784
  %v797 = vadd.f32 %v679, %v789
  %v798 = vadd.f32 %v682, %v792
  %v799 = vld [vmem:[%s1 + $0x50] sm:$0xf]
  %v800 = vld [vmem:[%s1 + $0x54] sm:$0xf]
  %v801 = vld [vmem:[%s1 + $0x58] sm:$0xf]
  %v802 = vld [vmem:[%s1 + $0x5c] sm:$0xf]
  %v803 = vpack.c.bf16 %v621, %v620
  %v804 = vpack.c.bf16 %v623, %v622
  %v809 = vunpack.c.l.b16 %v799
  %v810 = vunpack.c.l.b16 %v800
  %v811 = vunpack.c.l.b16 %v801
  %v812 = vunpack.c.l.b16 %v802
  %v813 = vpack.c.b16 %v810, %v809
  %v814 = vpack.c.b16 %v812, %v811
  %v818 = vsel %vm248, %v803, 0
  %v821 = vsel %vm248, %v804, 0
  %823 = vmatprep.subr.bf16.mxu0 0
  %824 = vmatpush1.bf16.msra.mxu0 %v813
  %825 = vmatprep.subr.bf16.mxu0 0
  %826 = vmatpush1.bf16.msra.mxu0 %v814
  %827 = vmatprep.subr.bf16.mxu0 0
  %828 = vmatpush1.bf16.msra.mxu0 0
  %829 = vmatprep.subr.bf16.mxu0 0
  %830 = vmatpush1.bf16.msra.mxu0 0
  %831 = vmatprep.subr.bf16.mxu0 0
  %832 = vmatpush1.bf16.msra.mxu0 0
  %833 = vmatprep.subr.bf16.mxu0 0
  %834 = vmatpush1.bf16.msra.mxu0 0
  %835 = vmatprep.subr.bf16.mxu0 0
  %836 = vmatpush1.bf16.msra.mxu0 0
  %837 = vmatprep.subr.bf16.mxu0 0
  %838 = vmatpush1.bf16.msra.mxu0 0
  %839 = vmatprep.subr.bf16.mxu0 0
  %840 = vmatpush1.bf16.msra.mxu0 0
  %841 = vmatprep.subr.bf16.mxu0 0
  %842 = vmatpush1.bf16.msra.mxu0 0
  %843 = vmatprep.subr.bf16.mxu0 0
  %844 = vmatpush1.bf16.msra.mxu0 0
  %845 = vmatprep.subr.bf16.mxu0 0
  %846 = vmatpush1.bf16.msra.mxu0 0
  %847 = vmatprep.subr.bf16.mxu0 0
  %848 = vmatpush1.bf16.msra.mxu0 0
  %849 = vmatprep.subr.bf16.mxu0 0
  %850 = vmatpush1.bf16.msra.mxu0 0
  %851 = vmatprep.subr.bf16.mxu0 0
  %852 = vmatpush1.bf16.msra.mxu0 0
  %853 = vmatprep.subr.bf16.mxu0 0
  %854 = vmatpush1.bf16.msra.mxu0 0
  %855 = vmatprep.mubr.bf16.mxu0 0
  %856 = vmatmul.mubr.bf16.gmra.mrb[0].mxu0 %v818
  %v857 = vpop.f32.mrb[0].mxu0
  %v858 = vadd.f32 0.0, %v857
  %v859 = vpop.f32.mrb[0].mxu0
  %v860 = vpop.f32.mrb[0].mxu0
  %v861 = vadd.f32 0.0, %v860
  %v862 = vpop.f32.mrb[0].mxu0
  %863 = vmatprep.mubr.bf16.mxu0 0
  %864 = vmatmul.mubr.bf16.gmra.mrb[0].mxu0 %v821
  %v865 = vpop.f32.mrb[0].mxu0
  %v866 = vadd.f32 0.0, %v865
  %v867 = vpop.f32.mrb[0].mxu0
  %v868 = vpop.f32.mrb[0].mxu0
  %v869 = vadd.f32 0.0, %v868
  %v870 = vpop.f32.mrb[0].mxu0
  %871 = vdwg.mxu0
  %v872 = vadd.f32 %v795, %v858
  %v873 = vadd.f32 %v796, %v861
  %v874 = vadd.f32 %v797, %v866
  %v875 = vadd.f32 %v798, %v869
  %v876 = vrot.slane %v620, 2
  %v877 = vrot.slane %v621, 2
  %v878 = vrot.slane %v622, 2
  %v879 = vrot.slane %v623, 2
  %vm880 = vcmp.lt.s32.totalorder %v39, 6
  %v881 = vsel %vm880, %v878, %v879
  %v882 = vsel %vm880, %v877, %v878
  %v883 = vsel %vm880, %v876, %v877
  %v884 = vsel %vm880, %v879, %v876
  %v885 = vadd.s32 %v43, 2
  %v886 = vadd.s32 %v44, 2
  %v887 = vadd.s32 %v45, 2
  %v888 = vadd.s32 %v46, 2
  %vm889 = vcmp.ge.s32.totalorder %v885, 0
  %vm890 = vcmp.ge.s32.totalorder %v886, 0
  %vm891 = vcmp.ge.s32.totalorder %v887, 0
  %vm892 = vcmp.ge.s32.totalorder %v888, 0
  %vm893 = vcmp.lt.s32.totalorder %v885, 16
  %vm894 = vcmp.lt.s32.totalorder %v886, 16
  %vm895 = vcmp.lt.s32.totalorder %v887, 16
  %vm896 = vcmp.lt.s32.totalorder %v888, 16
  %vm897 = vmand %vm889, %vm893
  %vm898 = vmand %vm890, %vm894
  %vm899 = vmand %vm891, %vm895
  %vm900 = vmand %vm892, %vm896
  %v901 = vsel %vm897, 1, 0
  %v902 = vsel %vm898, 1, 0
  %v903 = vsel %vm899, 1, 0
  %v904 = vsel %vm900, 1, 0
  %v905 = vcvt.s32.f32 %v901
  %v906 = vcvt.s32.f32 %v902
  %v907 = vcvt.s32.f32 %v903
  %v908 = vcvt.s32.f32 %v904
  %v909 = vmul.f32 %v883, %v905
  %v910 = vmul.f32 %v882, %v906
  %v911 = vmul.f32 %v881, %v907
  %v912 = vmul.f32 %v884, %v908
  %v913 = vld [vmem:[%s1 + $0x60] sm:$0xf]
  %v914 = vld [vmem:[%s1 + $0x64] sm:$0xf]
  %v915 = vld [vmem:[%s1 + $0x68] sm:$0xf]
  %v916 = vld [vmem:[%s1 + $0x6c] sm:$0xf]
  %v917 = vpack.c.bf16 %v910, %v909
  %v918 = vpack.c.bf16 %v912, %v911
  %v923 = vunpack.c.l.b16 %v913
  %v924 = vunpack.c.l.b16 %v914
  %v925 = vunpack.c.l.b16 %v915
  %v926 = vunpack.c.l.b16 %v916
  %v927 = vpack.c.b16 %v924, %v923
  %v928 = vpack.c.b16 %v926, %v925
  %v932 = vsel %vm248, %v917, 0
  %v935 = vsel %vm248, %v918, 0
  %937 = vmatprep.subr.bf16.mxu0 0
  %938 = vmatpush1.bf16.msra.mxu0 %v927
  %939 = vmatprep.subr.bf16.mxu0 0
  %940 = vmatpush1.bf16.msra.mxu0 %v928
  %941 = vmatprep.subr.bf16.mxu0 0
  %942 = vmatpush1.bf16.msra.mxu0 0
  %943 = vmatprep.subr.bf16.mxu0 0
  %944 = vmatpush1.bf16.msra.mxu0 0
  %945 = vmatprep.subr.bf16.mxu0 0
  %946 = vmatpush1.bf16.msra.mxu0 0
  %947 = vmatprep.subr.bf16.mxu0 0
  %948 = vmatpush1.bf16.msra.mxu0 0
  %949 = vmatprep.subr.bf16.mxu0 0
  %950 = vmatpush1.bf16.msra.mxu0 0
  %951 = vmatprep.subr.bf16.mxu0 0
  %952 = vmatpush1.bf16.msra.mxu0 0
  %953 = vmatprep.subr.bf16.mxu0 0
  %954 = vmatpush1.bf16.msra.mxu0 0
  %955 = vmatprep.subr.bf16.mxu0 0
  %956 = vmatpush1.bf16.msra.mxu0 0
  %957 = vmatprep.subr.bf16.mxu0 0
  %958 = vmatpush1.bf16.msra.mxu0 0
  %959 = vmatprep.subr.bf16.mxu0 0
  %960 = vmatpush1.bf16.msra.mxu0 0
  %961 = vmatprep.subr.bf16.mxu0 0
  %962 = vmatpush1.bf16.msra.mxu0 0
  %963 = vmatprep.subr.bf16.mxu0 0
  %964 = vmatpush1.bf16.msra.mxu0 0
  %965 = vmatprep.subr.bf16.mxu0 0
  %966 = vmatpush1.bf16.msra.mxu0 0
  %967 = vmatprep.subr.bf16.mxu0 0
  %968 = vmatpush1.bf16.msra.mxu0 0
  %969 = vmatprep.mubr.bf16.mxu0 0
  %970 = vmatmul.mubr.bf16.gmra.mrb[0].mxu0 %v932
  %v971 = vpop.f32.mrb[0].mxu0
  %v972 = vadd.f32 0.0, %v971
  %v973 = vpop.f32.mrb[0].mxu0
  %v974 = vpop.f32.mrb[0].mxu0
  %v975 = vadd.f32 0.0, %v974
  %v976 = vpop.f32.mrb[0].mxu0
  %977 = vmatprep.mubr.bf16.mxu0 0
  %978 = vmatmul.mubr.bf16.gmra.mrb[0].mxu0 %v935
  %v979 = vpop.f32.mrb[0].mxu0
  %v980 = vadd.f32 0.0, %v979
  %v981 = vpop.f32.mrb[0].mxu0
  %v982 = vpop.f32.mrb[0].mxu0
  %v983 = vadd.f32 0.0, %v982
  %v984 = vpop.f32.mrb[0].mxu0
  %985 = vdwg.mxu0
  %v986 = vadd.f32 %v872, %v972
  %v987 = vadd.f32 %v873, %v975
  %v988 = vadd.f32 %v874, %v980
  %v989 = vadd.f32 %v875, %v983
  %v990 = vmul.f32 %v986, 0.5
  %v991 = vmul.f32 %v987, 0.5
  %v992 = vmul.f32 %v988, 0.5
  %v993 = vmul.f32 %v989, 0.5
  %v994 = vtanh.pop %v990
  %v995 = vtanh.pop %v991
  %v996 = vtanh.pop %v992
  %v997 = vtanh.pop %v993
  %v998 = vmul.f32 %v994, 0.5
  %v999 = vmul.f32 %v995, 0.5
  %v1000 = vmul.f32 %v996, 0.5
  %v1001 = vmul.f32 %v997, 0.5
  %v1002 = vadd.f32 %v998, 0.5
  %v1003 = vadd.f32 %v999, 0.5
  %v1004 = vadd.f32 %v1000, 0.5
  %v1005 = vadd.f32 %v1001, 0.5
  %v1006 = vtanh.pop %v986
  %v1007 = vtanh.pop %v987
  %v1008 = vtanh.pop %v988
  %v1009 = vtanh.pop %v989
  %1014 = vrot.lane.b32.xlu0 %v1002, 96
  %v1015 = vpop.permute.xlu0 %1014
  %1016 = vrot.lane.b32.xlu0 %v1003, 96
  %v1017 = vpop.permute.xlu0 %1016
  %1018 = vrot.lane.b32.xlu0 %v1004, 96
  %v1019 = vpop.permute.xlu0 %1018
  %1020 = vrot.lane.b32.xlu0 %v1005, 96
  %v1021 = vpop.permute.xlu0 %1020
  %v1026 = vmul.f32 %v1006, %v1015
  %v1027 = vmul.f32 %v1007, %v1017
  %v1028 = vmul.f32 %v1008, %v1019
  %v1029 = vmul.f32 %v1009, %v1021
  %v1030 = vpack.c.bf16 %v1027, %v1026
  %v1031 = vpack.c.bf16 %v1029, %v1028
  %v1032 = vld [vmem:[%s1 + $0xc0] sm:$0xf]
  %v1033 = vld [vmem:[%s1 + $0xc4] sm:$0xf]
  %v1034 = vld [vmem:[%s1 + $0xc8] sm:$0xf]
  %v1035 = vld [vmem:[%s1 + $0xcc] sm:$0xf]
  %v1036 = vlaneseq
  %v1037 = vshrl.u32 %v1036, 7
  %v1038 = vsub.s32 5, %v1037
  %v1039 = vrot.slane %v37, %v1038
  %v1044 = vunpack.c.l.b16 %v1032
  %v1045 = vunpack.c.l.b16 %v1033
  %v1046 = vunpack.c.l.b16 %v1034
  %v1047 = vunpack.c.l.b16 %v1035
  %v1048 = vpack.c.b16 %v1045, %v1044
  %v1049 = vpack.c.b16 %v1047, %v1046
  %v1053 = vsel %vm248, %v1030, 0
  %v1056 = vsel %vm248, %v1031, 0
  %1058 = vmatprep.subr.bf16.mxu0 0
  %1059 = vmatpush1.bf16.msra.mxu0 %v1048
  %1060 = vmatprep.subr.bf16.mxu0 0
  %1061 = vmatpush1.bf16.msra.mxu0 %v1049
  %1062 = vmatprep.subr.bf16.mxu0 0
  %1063 = vmatpush1.bf16.msra.mxu0 0
  %1064 = vmatprep.subr.bf16.mxu0 0
  %1065 = vmatpush1.bf16.msra.mxu0 0
  %1066 = vmatprep.subr.bf16.mxu0 0
  %1067 = vmatpush1.bf16.msra.mxu0 0
  %1068 = vmatprep.subr.bf16.mxu0 0
  %1069 = vmatpush1.bf16.msra.mxu0 0
  %1070 = vmatprep.subr.bf16.mxu0 0
  %1071 = vmatpush1.bf16.msra.mxu0 0
  %1072 = vmatprep.subr.bf16.mxu0 0
  %1073 = vmatpush1.bf16.msra.mxu0 0
  %1074 = vmatprep.subr.bf16.mxu0 0
  %1075 = vmatpush1.bf16.msra.mxu0 0
  %1076 = vmatprep.subr.bf16.mxu0 0
  %1077 = vmatpush1.bf16.msra.mxu0 0
  %1078 = vmatprep.subr.bf16.mxu0 0
  %1079 = vmatpush1.bf16.msra.mxu0 0
  %1080 = vmatprep.subr.bf16.mxu0 0
  %1081 = vmatpush1.bf16.msra.mxu0 0
  %1082 = vmatprep.subr.bf16.mxu0 0
  %1083 = vmatpush1.bf16.msra.mxu0 0
  %1084 = vmatprep.subr.bf16.mxu0 0
  %1085 = vmatpush1.bf16.msra.mxu0 0
  %1086 = vmatprep.subr.bf16.mxu0 0
  %1087 = vmatpush1.bf16.msra.mxu0 0
  %1088 = vmatprep.subr.bf16.mxu0 0
  %1089 = vmatpush1.bf16.msra.mxu0 0
  %1090 = vmatprep.mubr.bf16.mxu0 0
  %1091 = vmatmul.mubr.bf16.gmra.mrb[0].mxu0 %v1053
  %v1092 = vpop.f32.mrb[0].mxu0
  %v1093 = vadd.f32 %v1039, %v1092
  %v1094 = vpop.f32.mrb[0].mxu0
  %v1095 = vpop.f32.mrb[0].mxu0
  %v1096 = vadd.f32 %v1039, %v1095
  %v1097 = vpop.f32.mrb[0].mxu0
  %1098 = vmatprep.mubr.bf16.mxu0 0
  %1099 = vmatmul.mubr.bf16.gmra.mrb[0].mxu0 %v1056
  %v1100 = vpop.f32.mrb[0].mxu0
  %v1101 = vadd.f32 %v1039, %v1100
  %v1102 = vpop.f32.mrb[0].mxu0
  %v1103 = vpop.f32.mrb[0].mxu0
  %v1104 = vadd.f32 %v1039, %v1103
  %v1105 = vpop.f32.mrb[0].mxu0
  %1106 = vdwg.mxu0
  %v1107 = vadd.f32 %v620, %v1093
  %v1108 = vadd.f32 %v621, %v1096
  %v1109 = vadd.f32 %v622, %v1101
  %v1110 = vadd.f32 %v623, %v1104
  %v1111 = vmul.f32 %v1107, %v19
  %v1112 = vmul.f32 %v1108, %v24
  %v1113 = vmul.f32 %v1109, %v29
  %v1114 = vmul.f32 %v1110, %v34
  %v1115 = vadd.f32 %v624, %v1093
  %v1116 = vadd.f32 %v625, %v1096
  %v1117 = vadd.f32 %v626, %v1101
  %v1118 = vadd.f32 %v627, %v1104
  %v1119 = vld [vmem:[%s1 + $0xa8] sm:$0xf]
  %v1120 = vlaneseq
  %v1121 = vshrl.u32 %v1120, 7
  %v1122 = vsub.s32 3, %v1121
  %v1123 = vrot.slane %v37, %v1122
  %v1125 = vsel %vm67, %v1119, 0
  %1127 = vmatprep.subr.bf16.mxu0 0
  %1128 = vmatpush1.bf16.msra.mxu0 %v1125
  %1129 = vmatprep.subr.bf16.mxu0 0
  %1130 = vmatpush1.bf16.msra.mxu0 0
  %1131 = vmatprep.subr.bf16.mxu0 0
  %1132 = vmatpush1.bf16.msra.mxu0 0
  %1133 = vmatprep.subr.bf16.mxu0 0
  %1134 = vmatpush1.bf16.msra.mxu0 0
  %1135 = vmatprep.subr.bf16.mxu0 0
  %1136 = vmatpush1.bf16.msra.mxu0 0
  %1137 = vmatprep.subr.bf16.mxu0 0
  %1138 = vmatpush1.bf16.msra.mxu0 0
  %1139 = vmatprep.subr.bf16.mxu0 0
  %1140 = vmatpush1.bf16.msra.mxu0 0
  %1141 = vmatprep.subr.bf16.mxu0 0
  %1142 = vmatpush1.bf16.msra.mxu0 0
  %1143 = vmatprep.subr.bf16.mxu0 0
  %1144 = vmatpush1.bf16.msra.mxu0 0
  %1145 = vmatprep.subr.bf16.mxu0 0
  %1146 = vmatpush1.bf16.msra.mxu0 0
  %1147 = vmatprep.subr.bf16.mxu0 0
  %1148 = vmatpush1.bf16.msra.mxu0 0
  %1149 = vmatprep.subr.bf16.mxu0 0
  %1150 = vmatpush1.bf16.msra.mxu0 0
  %1151 = vmatprep.subr.bf16.mxu0 0
  %1152 = vmatpush1.bf16.msra.mxu0 0
  %1153 = vmatprep.subr.bf16.mxu0 0
  %1154 = vmatpush1.bf16.msra.mxu0 0
  %1155 = vmatprep.subr.bf16.mxu0 0
  %1156 = vmatpush1.bf16.msra.mxu0 0
  %1157 = vmatprep.subr.bf16.mxu0 0
  %1158 = vmatpush1.bf16.msra.mxu0 0
  %1159 = vmatprep.mubr.bf16.mxu0 0
  %1160 = vmatmul.mubr.bf16.gmra.mrb[0].mxu0 %v136
  %v1161 = vpop.f32.mrb[0].mxu0
  %v1162 = vadd.f32 %v1123, %v1161
  %v1163 = vpop.f32.mrb[0].mxu0
  %v1164 = vpop.f32.mrb[0].mxu0
  %v1165 = vadd.f32 %v1123, %v1164
  %v1166 = vpop.f32.mrb[0].mxu0
  %1167 = vmatprep.mubr.bf16.mxu0 0
  %1168 = vmatmul.mubr.bf16.gmra.mrb[0].mxu0 %v139
  %v1169 = vpop.f32.mrb[0].mxu0
  %v1170 = vadd.f32 %v1123, %v1169
  %v1171 = vpop.f32.mrb[0].mxu0
  %v1172 = vpop.f32.mrb[0].mxu0
  %v1173 = vadd.f32 %v1123, %v1172
  %v1174 = vpop.f32.mrb[0].mxu0
  %1175 = vdwg.mxu0
  %v1176 = vrot.slane %v1111, 4
  %v1177 = vrot.slane %v1112, 4
  %v1178 = vrot.slane %v1113, 4
  %v1179 = vrot.slane %v1114, 4
  %vm1180 = vcmp.lt.s32.totalorder %v39, 4
  %v1181 = vsel %vm1180, %v1178, %v1179
  %v1182 = vsel %vm1180, %v1177, %v1178
  %v1183 = vsel %vm1180, %v1176, %v1177
  %v1184 = vsel %vm1180, %v1179, %v1176
  %v1185 = vadd.s32 %v43, 4294967292
  %v1186 = vadd.s32 %v44, 4294967292
  %v1187 = vadd.s32 %v45, 4294967292
  %v1188 = vadd.s32 %v46, 4294967292
  %vm1189 = vcmp.ge.s32.totalorder %v1185, 0
  %vm1190 = vcmp.ge.s32.totalorder %v1186, 0
  %vm1191 = vcmp.ge.s32.totalorder %v1187, 0
  %vm1192 = vcmp.ge.s32.totalorder %v1188, 0
  %vm1193 = vcmp.lt.s32.totalorder %v1185, 16
  %vm1194 = vcmp.lt.s32.totalorder %v1186, 16
  %vm1195 = vcmp.lt.s32.totalorder %v1187, 16
  %vm1196 = vcmp.lt.s32.totalorder %v1188, 16
  %vm1197 = vmand %vm1189, %vm1193
  %vm1198 = vmand %vm1190, %vm1194
  %vm1199 = vmand %vm1191, %vm1195
  %vm1200 = vmand %vm1192, %vm1196
  %v1201 = vsel %vm1197, 1, 0
  %v1202 = vsel %vm1198, 1, 0
  %v1203 = vsel %vm1199, 1, 0
  %v1204 = vsel %vm1200, 1, 0
  %v1205 = vcvt.s32.f32 %v1201
  %v1206 = vcvt.s32.f32 %v1202
  %v1207 = vcvt.s32.f32 %v1203
  %v1208 = vcvt.s32.f32 %v1204
  %v1209 = vmul.f32 %v1184, %v1205
  %v1210 = vmul.f32 %v1183, %v1206
  %v1211 = vmul.f32 %v1182, %v1207
  %v1212 = vmul.f32 %v1181, %v1208
  %v1213 = vld [vmem:[%s1 + $0x78] sm:$0xf]
  %v1214 = vld [vmem:[%s1 + $0x7c] sm:$0xf]
  %v1215 = vld [vmem:[%s1 + $0x80] sm:$0xf]
  %v1216 = vld [vmem:[%s1 + $0x84] sm:$0xf]
  %v1217 = vpack.c.bf16 %v1210, %v1209
  %v1218 = vpack.c.bf16 %v1212, %v1211
  %v1223 = vunpack.c.l.b16 %v1213
  %v1224 = vunpack.c.l.b16 %v1214
  %v1225 = vunpack.c.l.b16 %v1215
  %v1226 = vunpack.c.l.b16 %v1216
  %v1227 = vpack.c.b16 %v1224, %v1223
  %v1228 = vpack.c.b16 %v1226, %v1225
  %v1232 = vsel %vm248, %v1217, 0
  %v1235 = vsel %vm248, %v1218, 0
  %1237 = vmatprep.subr.bf16.mxu0 0
  %1238 = vmatpush1.bf16.msra.mxu0 %v1227
  %1239 = vmatprep.subr.bf16.mxu0 0
  %1240 = vmatpush1.bf16.msra.mxu0 %v1228
  %1241 = vmatprep.subr.bf16.mxu0 0
  %1242 = vmatpush1.bf16.msra.mxu0 0
  %1243 = vmatprep.subr.bf16.mxu0 0
  %1244 = vmatpush1.bf16.msra.mxu0 0
  %1245 = vmatprep.subr.bf16.mxu0 0
  %1246 = vmatpush1.bf16.msra.mxu0 0
  %1247 = vmatprep.subr.bf16.mxu0 0
  %1248 = vmatpush1.bf16.msra.mxu0 0
  %1249 = vmatprep.subr.bf16.mxu0 0
  %1250 = vmatpush1.bf16.msra.mxu0 0
  %1251 = vmatprep.subr.bf16.mxu0 0
  %1252 = vmatpush1.bf16.msra.mxu0 0
  %1253 = vmatprep.subr.bf16.mxu0 0
  %1254 = vmatpush1.bf16.msra.mxu0 0
  %1255 = vmatprep.subr.bf16.mxu0 0
  %1256 = vmatpush1.bf16.msra.mxu0 0
  %1257 = vmatprep.subr.bf16.mxu0 0
  %1258 = vmatpush1.bf16.msra.mxu0 0
  %1259 = vmatprep.subr.bf16.mxu0 0
  %1260 = vmatpush1.bf16.msra.mxu0 0
  %1261 = vmatprep.subr.bf16.mxu0 0
  %1262 = vmatpush1.bf16.msra.mxu0 0
  %1263 = vmatprep.subr.bf16.mxu0 0
  %1264 = vmatpush1.bf16.msra.mxu0 0
  %1265 = vmatprep.subr.bf16.mxu0 0
  %1266 = vmatpush1.bf16.msra.mxu0 0
  %1267 = vmatprep.subr.bf16.mxu0 0
  %1268 = vmatpush1.bf16.msra.mxu0 0
  %1269 = vmatprep.mubr.bf16.mxu0 0
  %1270 = vmatmul.mubr.bf16.gmra.mrb[0].mxu0 %v1232
  %v1271 = vpop.f32.mrb[0].mxu0
  %v1272 = vadd.f32 0.0, %v1271
  %v1273 = vpop.f32.mrb[0].mxu0
  %v1274 = vpop.f32.mrb[0].mxu0
  %v1275 = vadd.f32 0.0, %v1274
  %v1276 = vpop.f32.mrb[0].mxu0
  %1277 = vmatprep.mubr.bf16.mxu0 0
  %1278 = vmatmul.mubr.bf16.gmra.mrb[0].mxu0 %v1235
  %v1279 = vpop.f32.mrb[0].mxu0
  %v1280 = vadd.f32 0.0, %v1279
  %v1281 = vpop.f32.mrb[0].mxu0
  %v1282 = vpop.f32.mrb[0].mxu0
  %v1283 = vadd.f32 0.0, %v1282
  %v1284 = vpop.f32.mrb[0].mxu0
  %1285 = vdwg.mxu0
  %v1286 = vadd.f32 %v1162, %v1272
  %v1287 = vadd.f32 %v1165, %v1275
  %v1288 = vadd.f32 %v1170, %v1280
  %v1289 = vadd.f32 %v1173, %v1283
  %v1290 = vld [vmem:[%s1 + $0x88] sm:$0xf]
  %v1291 = vld [vmem:[%s1 + $0x8c] sm:$0xf]
  %v1292 = vld [vmem:[%s1 + $0x90] sm:$0xf]
  %v1293 = vld [vmem:[%s1 + $0x94] sm:$0xf]
  %v1294 = vpack.c.bf16 %v1112, %v1111
  %v1295 = vpack.c.bf16 %v1114, %v1113
  %v1300 = vunpack.c.l.b16 %v1290
  %v1301 = vunpack.c.l.b16 %v1291
  %v1302 = vunpack.c.l.b16 %v1292
  %v1303 = vunpack.c.l.b16 %v1293
  %v1304 = vpack.c.b16 %v1301, %v1300
  %v1305 = vpack.c.b16 %v1303, %v1302
  %v1309 = vsel %vm248, %v1294, 0
  %v1312 = vsel %vm248, %v1295, 0
  %1314 = vmatprep.subr.bf16.mxu0 0
  %1315 = vmatpush1.bf16.msra.mxu0 %v1304
  %1316 = vmatprep.subr.bf16.mxu0 0
  %1317 = vmatpush1.bf16.msra.mxu0 %v1305
  %1318 = vmatprep.subr.bf16.mxu0 0
  %1319 = vmatpush1.bf16.msra.mxu0 0
  %1320 = vmatprep.subr.bf16.mxu0 0
  %1321 = vmatpush1.bf16.msra.mxu0 0
  %1322 = vmatprep.subr.bf16.mxu0 0
  %1323 = vmatpush1.bf16.msra.mxu0 0
  %1324 = vmatprep.subr.bf16.mxu0 0
  %1325 = vmatpush1.bf16.msra.mxu0 0
  %1326 = vmatprep.subr.bf16.mxu0 0
  %1327 = vmatpush1.bf16.msra.mxu0 0
  %1328 = vmatprep.subr.bf16.mxu0 0
  %1329 = vmatpush1.bf16.msra.mxu0 0
  %1330 = vmatprep.subr.bf16.mxu0 0
  %1331 = vmatpush1.bf16.msra.mxu0 0
  %1332 = vmatprep.subr.bf16.mxu0 0
  %1333 = vmatpush1.bf16.msra.mxu0 0
  %1334 = vmatprep.subr.bf16.mxu0 0
  %1335 = vmatpush1.bf16.msra.mxu0 0
  %1336 = vmatprep.subr.bf16.mxu0 0
  %1337 = vmatpush1.bf16.msra.mxu0 0
  %1338 = vmatprep.subr.bf16.mxu0 0
  %1339 = vmatpush1.bf16.msra.mxu0 0
  %1340 = vmatprep.subr.bf16.mxu0 0
  %1341 = vmatpush1.bf16.msra.mxu0 0
  %1342 = vmatprep.subr.bf16.mxu0 0
  %1343 = vmatpush1.bf16.msra.mxu0 0
  %1344 = vmatprep.subr.bf16.mxu0 0
  %1345 = vmatpush1.bf16.msra.mxu0 0
  %1346 = vmatprep.mubr.bf16.mxu0 0
  %1347 = vmatmul.mubr.bf16.gmra.mrb[0].mxu0 %v1309
  %v1348 = vpop.f32.mrb[0].mxu0
  %v1349 = vadd.f32 0.0, %v1348
  %v1350 = vpop.f32.mrb[0].mxu0
  %v1351 = vpop.f32.mrb[0].mxu0
  %v1352 = vadd.f32 0.0, %v1351
  %v1353 = vpop.f32.mrb[0].mxu0
  %1354 = vmatprep.mubr.bf16.mxu0 0
  %1355 = vmatmul.mubr.bf16.gmra.mrb[0].mxu0 %v1312
  %v1356 = vpop.f32.mrb[0].mxu0
  %v1357 = vadd.f32 0.0, %v1356
  %v1358 = vpop.f32.mrb[0].mxu0
  %v1359 = vpop.f32.mrb[0].mxu0
  %v1360 = vadd.f32 0.0, %v1359
  %v1361 = vpop.f32.mrb[0].mxu0
  %1362 = vdwg.mxu0
  %v1363 = vadd.f32 %v1286, %v1349
  %v1364 = vadd.f32 %v1287, %v1352
  %v1365 = vadd.f32 %v1288, %v1357
  %v1366 = vadd.f32 %v1289, %v1360
  %v1367 = vadd.s32 %v43, 4
  %v1368 = vadd.s32 %v44, 4
  %v1369 = vadd.s32 %v45, 4
  %v1370 = vadd.s32 %v46, 4
  %vm1371 = vcmp.ge.s32.totalorder %v1367, 0
  %vm1372 = vcmp.ge.s32.totalorder %v1368, 0
  %vm1373 = vcmp.ge.s32.totalorder %v1369, 0
  %vm1374 = vcmp.ge.s32.totalorder %v1370, 0
  %vm1375 = vcmp.lt.s32.totalorder %v1367, 16
  %vm1376 = vcmp.lt.s32.totalorder %v1368, 16
  %vm1377 = vcmp.lt.s32.totalorder %v1369, 16
  %vm1378 = vcmp.lt.s32.totalorder %v1370, 16
  %vm1379 = vmand %vm1371, %vm1375
  %vm1380 = vmand %vm1372, %vm1376
  %vm1381 = vmand %vm1373, %vm1377
  %vm1382 = vmand %vm1374, %vm1378
  %v1383 = vsel %vm1379, 1, 0
  %v1384 = vsel %vm1380, 1, 0
  %v1385 = vsel %vm1381, 1, 0
  %v1386 = vsel %vm1382, 1, 0
  %v1387 = vcvt.s32.f32 %v1383
  %v1388 = vcvt.s32.f32 %v1384
  %v1389 = vcvt.s32.f32 %v1385
  %v1390 = vcvt.s32.f32 %v1386
  %v1391 = vmul.f32 %v1183, %v1387
  %v1392 = vmul.f32 %v1182, %v1388
  %v1393 = vmul.f32 %v1181, %v1389
  %v1394 = vmul.f32 %v1184, %v1390
  %v1395 = vld [vmem:[%s1 + $0x98] sm:$0xf]
  %v1396 = vld [vmem:[%s1 + $0x9c] sm:$0xf]
  %v1397 = vld [vmem:[%s1 + $0xa0] sm:$0xf]
  %v1398 = vld [vmem:[%s1 + $0xa4] sm:$0xf]
  %v1399 = vpack.c.bf16 %v1392, %v1391
  %v1400 = vpack.c.bf16 %v1394, %v1393
  %v1405 = vunpack.c.l.b16 %v1395
  %v1406 = vunpack.c.l.b16 %v1396
  %v1407 = vunpack.c.l.b16 %v1397
  %v1408 = vunpack.c.l.b16 %v1398
  %v1409 = vpack.c.b16 %v1406, %v1405
  %v1410 = vpack.c.b16 %v1408, %v1407
  %v1414 = vsel %vm248, %v1399, 0
  %v1417 = vsel %vm248, %v1400, 0
  %1419 = vmatprep.subr.bf16.mxu0 0
  %1420 = vmatpush1.bf16.msra.mxu0 %v1409
  %1421 = vmatprep.subr.bf16.mxu0 0
  %1422 = vmatpush1.bf16.msra.mxu0 %v1410
  %1423 = vmatprep.subr.bf16.mxu0 0
  %1424 = vmatpush1.bf16.msra.mxu0 0
  %1425 = vmatprep.subr.bf16.mxu0 0
  %1426 = vmatpush1.bf16.msra.mxu0 0
  %1427 = vmatprep.subr.bf16.mxu0 0
  %1428 = vmatpush1.bf16.msra.mxu0 0
  %1429 = vmatprep.subr.bf16.mxu0 0
  %1430 = vmatpush1.bf16.msra.mxu0 0
  %1431 = vmatprep.subr.bf16.mxu0 0
  %1432 = vmatpush1.bf16.msra.mxu0 0
  %1433 = vmatprep.subr.bf16.mxu0 0
  %1434 = vmatpush1.bf16.msra.mxu0 0
  %1435 = vmatprep.subr.bf16.mxu0 0
  %1436 = vmatpush1.bf16.msra.mxu0 0
  %1437 = vmatprep.subr.bf16.mxu0 0
  %1438 = vmatpush1.bf16.msra.mxu0 0
  %1439 = vmatprep.subr.bf16.mxu0 0
  %1440 = vmatpush1.bf16.msra.mxu0 0
  %1441 = vmatprep.subr.bf16.mxu0 0
  %1442 = vmatpush1.bf16.msra.mxu0 0
  %1443 = vmatprep.subr.bf16.mxu0 0
  %1444 = vmatpush1.bf16.msra.mxu0 0
  %1445 = vmatprep.subr.bf16.mxu0 0
  %1446 = vmatpush1.bf16.msra.mxu0 0
  %1447 = vmatprep.subr.bf16.mxu0 0
  %1448 = vmatpush1.bf16.msra.mxu0 0
  %1449 = vmatprep.subr.bf16.mxu0 0
  %1450 = vmatpush1.bf16.msra.mxu0 0
  %1451 = vmatprep.mubr.bf16.mxu0 0
  %1452 = vmatmul.mubr.bf16.gmra.mrb[0].mxu0 %v1414
  %v1453 = vpop.f32.mrb[0].mxu0
  %v1454 = vadd.f32 0.0, %v1453
  %v1455 = vpop.f32.mrb[0].mxu0
  %v1456 = vpop.f32.mrb[0].mxu0
  %v1457 = vadd.f32 0.0, %v1456
  %v1458 = vpop.f32.mrb[0].mxu0
  %1459 = vmatprep.mubr.bf16.mxu0 0
  %1460 = vmatmul.mubr.bf16.gmra.mrb[0].mxu0 %v1417
  %v1461 = vpop.f32.mrb[0].mxu0
  %v1462 = vadd.f32 0.0, %v1461
  %v1463 = vpop.f32.mrb[0].mxu0
  %v1464 = vpop.f32.mrb[0].mxu0
  %v1465 = vadd.f32 0.0, %v1464
  %v1466 = vpop.f32.mrb[0].mxu0
  %1467 = vdwg.mxu0
  %v1468 = vadd.f32 %v1363, %v1454
  %v1469 = vadd.f32 %v1364, %v1457
  %v1470 = vadd.f32 %v1365, %v1462
  %v1471 = vadd.f32 %v1366, %v1465
  %v1472 = vmul.f32 %v1468, 0.5
  %v1473 = vmul.f32 %v1469, 0.5
  %v1474 = vmul.f32 %v1470, 0.5
  %v1475 = vmul.f32 %v1471, 0.5
  %v1476 = vtanh.pop %v1472
  %v1477 = vtanh.pop %v1473
  %v1478 = vtanh.pop %v1474
  %v1479 = vtanh.pop %v1475
  %v1480 = vmul.f32 %v1476, 0.5
  %v1481 = vmul.f32 %v1477, 0.5
  %v1482 = vmul.f32 %v1478, 0.5
  %v1483 = vmul.f32 %v1479, 0.5
  %v1484 = vadd.f32 %v1480, 0.5
  %v1485 = vadd.f32 %v1481, 0.5
  %v1486 = vadd.f32 %v1482, 0.5
  %v1487 = vadd.f32 %v1483, 0.5
  %v1488 = vtanh.pop %v1468
  %v1489 = vtanh.pop %v1469
  %v1490 = vtanh.pop %v1470
  %v1491 = vtanh.pop %v1471
  %1496 = vrot.lane.b32.xlu0 %v1484, 96
  %v1497 = vpop.permute.xlu0 %1496
  %1498 = vrot.lane.b32.xlu0 %v1485, 96
  %v1499 = vpop.permute.xlu0 %1498
  %1500 = vrot.lane.b32.xlu0 %v1486, 96
  %v1501 = vpop.permute.xlu0 %1500
  %1502 = vrot.lane.b32.xlu0 %v1487, 96
  %v1503 = vpop.permute.xlu0 %1502
  %v1508 = vmul.f32 %v1488, %v1497
  %v1509 = vmul.f32 %v1489, %v1499
  %v1510 = vmul.f32 %v1490, %v1501
  %v1511 = vmul.f32 %v1491, %v1503
  %v1512 = vpack.c.bf16 %v1509, %v1508
  %v1513 = vpack.c.bf16 %v1511, %v1510
  %v1514 = vld [vmem:[%s1 + $0xd0] sm:$0xf]
  %v1515 = vld [vmem:[%s1 + $0xd4] sm:$0xf]
  %v1516 = vld [vmem:[%s1 + $0xd8] sm:$0xf]
  %v1517 = vld [vmem:[%s1 + $0xdc] sm:$0xf]
  %v1518 = vlaneseq
  %v1519 = vshrl.u32 %v1518, 7
  %v1520 = vsub.s32 6, %v1519
  %v1521 = vrot.slane %v37, %v1520
  %v1526 = vunpack.c.l.b16 %v1514
  %v1527 = vunpack.c.l.b16 %v1515
  %v1528 = vunpack.c.l.b16 %v1516
  %v1529 = vunpack.c.l.b16 %v1517
  %v1530 = vpack.c.b16 %v1527, %v1526
  %v1531 = vpack.c.b16 %v1529, %v1528
  %v1535 = vsel %vm248, %v1512, 0
  %v1538 = vsel %vm248, %v1513, 0
  %1540 = vmatprep.subr.bf16.mxu0 0
  %1541 = vmatpush1.bf16.msra.mxu0 %v1530
  %1542 = vmatprep.subr.bf16.mxu0 0
  %1543 = vmatpush1.bf16.msra.mxu0 %v1531
  %1544 = vmatprep.subr.bf16.mxu0 0
  %1545 = vmatpush1.bf16.msra.mxu0 0
  %1546 = vmatprep.subr.bf16.mxu0 0
  %1547 = vmatpush1.bf16.msra.mxu0 0
  %1548 = vmatprep.subr.bf16.mxu0 0
  %1549 = vmatpush1.bf16.msra.mxu0 0
  %1550 = vmatprep.subr.bf16.mxu0 0
  %1551 = vmatpush1.bf16.msra.mxu0 0
  %1552 = vmatprep.subr.bf16.mxu0 0
  %1553 = vmatpush1.bf16.msra.mxu0 0
  %1554 = vmatprep.subr.bf16.mxu0 0
  %1555 = vmatpush1.bf16.msra.mxu0 0
  %1556 = vmatprep.subr.bf16.mxu0 0
  %1557 = vmatpush1.bf16.msra.mxu0 0
  %1558 = vmatprep.subr.bf16.mxu0 0
  %1559 = vmatpush1.bf16.msra.mxu0 0
  %1560 = vmatprep.subr.bf16.mxu0 0
  %1561 = vmatpush1.bf16.msra.mxu0 0
  %1562 = vmatprep.subr.bf16.mxu0 0
  %1563 = vmatpush1.bf16.msra.mxu0 0
  %1564 = vmatprep.subr.bf16.mxu0 0
  %1565 = vmatpush1.bf16.msra.mxu0 0
  %1566 = vmatprep.subr.bf16.mxu0 0
  %1567 = vmatpush1.bf16.msra.mxu0 0
  %1568 = vmatprep.subr.bf16.mxu0 0
  %1569 = vmatpush1.bf16.msra.mxu0 0
  %1570 = vmatprep.subr.bf16.mxu0 0
  %1571 = vmatpush1.bf16.msra.mxu0 0
  %1572 = vmatprep.mubr.bf16.mxu0 0
  %1573 = vmatmul.mubr.bf16.gmra.mrb[0].mxu0 %v1535
  %v1574 = vpop.f32.mrb[0].mxu0
  %v1575 = vadd.f32 %v1521, %v1574
  %v1576 = vpop.f32.mrb[0].mxu0
  %v1577 = vpop.f32.mrb[0].mxu0
  %v1578 = vadd.f32 %v1521, %v1577
  %v1579 = vpop.f32.mrb[0].mxu0
  %1580 = vmatprep.mubr.bf16.mxu0 0
  %1581 = vmatmul.mubr.bf16.gmra.mrb[0].mxu0 %v1538
  %v1582 = vpop.f32.mrb[0].mxu0
  %v1583 = vadd.f32 %v1521, %v1582
  %v1584 = vpop.f32.mrb[0].mxu0
  %v1585 = vpop.f32.mrb[0].mxu0
  %v1586 = vadd.f32 %v1521, %v1585
  %v1587 = vpop.f32.mrb[0].mxu0
  %1588 = vdwg.mxu0
  %1593 = vrot.lane.b32.xlu0 %v1575, 32
  %v1594 = vpop.permute.xlu0 %1593
  %1595 = vrot.lane.b32.xlu0 %v1578, 32
  %v1596 = vpop.permute.xlu0 %1595
  %1597 = vrot.lane.b32.xlu0 %v1583, 32
  %v1598 = vpop.permute.xlu0 %1597
  %1599 = vrot.lane.b32.xlu0 %v1586, 32
  %v1600 = vpop.permute.xlu0 %1599
  %v1605 = vadd.f32 %v1115, %v1594
  %v1606 = vadd.f32 %v1116, %v1596
  %v1607 = vadd.f32 %v1117, %v1598
  %v1608 = vadd.f32 %v1118, %v1600
  %v1609 = vmul.f32 %v1605, %v19
  %v1610 = vmul.f32 %v1606, %v24
  %v1611 = vmul.f32 %v1607, %v29
  %v1612 = vmul.f32 %v1608, %v34
  %v1613 = vld [vmem:[%s1 + $0xe0] sm:$0xf]
  %v1614 = vld [vmem:[%s1 + $0xe4] sm:$0xf]
  %v1615 = vld [vmem:[%s1 + $0xe8] sm:$0xf]
  %v1616 = vld [vmem:[%s1 + $0xec] sm:$0xf]
  %v1617 = vpack.c.bf16 %v1610, %v1609
  %v1618 = vpack.c.bf16 %v1612, %v1611
  %v1619 = vlaneseq
  %v1620 = vshrl.u32 %v1619, 7
  %v1621 = vsub.s32 7, %v1620
  %v1622 = vrot.slane %v37, %v1621
  %1625 = vrot.lane.b32.xlu0 %v1617, 96
  %v1626 = vpop.permute.xlu0 %1625
  %1627 = vrot.lane.b32.xlu0 %v1618, 96
  %v1628 = vpop.permute.xlu0 %1627
  %v1633 = vunpack.c.l.b16 %v1613
  %v1634 = vunpack.c.l.b16 %v1614
  %v1635 = vunpack.c.l.b16 %v1615
  %v1636 = vunpack.c.l.b16 %v1616
  %v1637 = vpack.c.b16 %v1634, %v1633
  %v1638 = vpack.c.b16 %v1636, %v1635
  %v1642 = vsel %vm248, %v1626, 0
  %v1645 = vsel %vm248, %v1628, 0
  %1647 = vmatprep.subr.bf16.mxu0 0
  %1648 = vmatpush1.bf16.msra.mxu0 %v1637
  %1649 = vmatprep.subr.bf16.mxu0 0
  %1650 = vmatpush1.bf16.msra.mxu0 %v1638
  %1651 = vmatprep.subr.bf16.mxu0 0
  %1652 = vmatpush1.bf16.msra.mxu0 0
  %1653 = vmatprep.subr.bf16.mxu0 0
  %1654 = vmatpush1.bf16.msra.mxu0 0
  %1655 = vmatprep.subr.bf16.mxu0 0
  %1656 = vmatpush1.bf16.msra.mxu0 0
  %1657 = vmatprep.subr.bf16.mxu0 0
  %1658 = vmatpush1.bf16.msra.mxu0 0
  %1659 = vmatprep.subr.bf16.mxu0 0
  %1660 = vmatpush1.bf16.msra.mxu0 0
  %1661 = vmatprep.subr.bf16.mxu0 0
  %1662 = vmatpush1.bf16.msra.mxu0 0
  %1663 = vmatprep.subr.bf16.mxu0 0
  %1664 = vmatpush1.bf16.msra.mxu0 0
  %1665 = vmatprep.subr.bf16.mxu0 0
  %1666 = vmatpush1.bf16.msra.mxu0 0
  %1667 = vmatprep.subr.bf16.mxu0 0
  %1668 = vmatpush1.bf16.msra.mxu0 0
  %1669 = vmatprep.subr.bf16.mxu0 0
  %1670 = vmatpush1.bf16.msra.mxu0 0
  %1671 = vmatprep.subr.bf16.mxu0 0
  %1672 = vmatpush1.bf16.msra.mxu0 0
  %1673 = vmatprep.subr.bf16.mxu0 0
  %1674 = vmatpush1.bf16.msra.mxu0 0
  %1675 = vmatprep.subr.bf16.mxu0 0
  %1676 = vmatpush1.bf16.msra.mxu0 0
  %1677 = vmatprep.subr.bf16.mxu0 0
  %1678 = vmatpush1.bf16.msra.mxu0 0
  %1679 = vmatprep.mubr.bf16.mxu0 0
  %1680 = vmatmul.mubr.bf16.gmra.mrb[0].mxu0 %v1642
  %v1681 = vpop.f32.mrb[0].mxu0
  %v1682 = vadd.f32 %v1622, %v1681
  %v1683 = vpop.f32.mrb[0].mxu0
  %v1684 = vpop.f32.mrb[0].mxu0
  %v1685 = vadd.f32 %v1622, %v1684
  %v1686 = vpop.f32.mrb[0].mxu0
  %1687 = vmatprep.mubr.bf16.mxu0 0
  %1688 = vmatmul.mubr.bf16.gmra.mrb[0].mxu0 %v1645
  %v1689 = vpop.f32.mrb[0].mxu0
  %v1690 = vadd.f32 %v1622, %v1689
  %v1691 = vpop.f32.mrb[0].mxu0
  %v1692 = vpop.f32.mrb[0].mxu0
  %v1693 = vadd.f32 %v1622, %v1692
  %v1694 = vpop.f32.mrb[0].mxu0
  %1695 = vdwg.mxu0
  %v1696 = vmul.f32 %v1682, %v19
  %v1697 = vmul.f32 %v1685, %v24
  %v1698 = vmul.f32 %v1690, %v29
  %v1699 = vmul.f32 %v1693, %v34
  %1700 = vst.msk [vmem:[%s2] sm:$0xff] %vm60, %v1696
  %1701 = vst.msk [vmem:[%s2 + $0x8] sm:$0xff] %vm60, %v1697
  %1702 = vst.msk [vmem:[%s2 + $0x10] sm:$0xff] %vm60, %v1698
  %1703 = vst.msk [vmem:[%s2 + $0x18] sm:$0xff] %vm60, %v1699
  // Predicated region
  $region10: #{decoder_pallas.1} parent=0 // pred_check
    _
  $region11: #{decoder_pallas.1} parent=0 // pred_check_branch
    %1705 = sbr.rel (0) target = $region13
  $region12: #{decoder_pallas.1} parent=0 // pred_region
    _
  $region13: #{decoder_pallas.1} parent=0 // pred_fallthru
    _
  // Predicated region
  $region14: #{decoder_pallas.1} parent=0 // pred_check
    _
  $region15: #{decoder_pallas.1} parent=0 // pred_check_branch
    %1707 = sbr.rel (0) target = $region17
  $region16: #{decoder_pallas.1} parent=0 // pred_region
    _
  $region17: #{decoder_pallas.1} parent=0 // pred_fallthru
    _

</llo_original>
